<compile_context>
chip_gen: v6e
topology: v6e:2x2x1
jax: 0.10.0
libtpu: 0.0.40
codegen_flags: <defaults>
</compile_context>

<pallas_src>
import math
import functools

import jax
import jax.numpy as jnp
from jax.experimental import pallas as pl
from jax.experimental.pallas import tpu as pltpu


# ----------------------------- in-kernel math helpers -----------------------------

def _erf_f32(x):
    # Abramowitz & Stegun 7.1.26, max abs error ~1.5e-7.  Division goes to the EUP.
    a1, a2, a3, a4, a5 = 0.254829592, -0.284496736, 1.421413741, -1.453152027, 1.061405429
    p = 0.3275911
    s = jnp.where(x < 0.0, -1.0, 1.0)
    ax = jnp.abs(x)
    t = pl.reciprocal(1.0 + p * ax, approx=True)
    poly = ((((a5 * t + a4) * t + a3) * t + a2) * t + a1) * t
    return s * (1.0 - poly * jnp.exp(-ax * ax))


def _gelu_exact(x):
    # nn.GELU() default = exact erf-based GELU.
    return 0.5 * x * (1.0 + _erf_f32(x * 0.7071067811865476))


def _atan_f32(x):
    # Cephes-style float32 atan (range reduction + degree-4 poly in z = x^2).
    # Single EUP reciprocal: select the denominator first, derive xr with selects.
    t3p8 = 2.414213562373095   # tan(3*pi/8)
    tp8 = 0.4142135623730951   # tan(pi/8)
    s = jnp.where(x < 0.0, -1.0, 1.0)
    ax = jnp.abs(x)
    big = ax > t3p8
    mid = jnp.logical_and(ax > tp8, jnp.logical_not(big))
    denom = jnp.where(big, ax, jnp.where(mid, ax + 1.0, 1.0))
    inv = pl.reciprocal(denom, approx=True)
    # big: xr = -1/ax ; mid: xr = (ax-1)/(ax+1) ; small: xr = ax
    xr = jnp.where(big, -inv, jnp.where(mid, (ax - 1.0) * inv, ax))
    y0 = jnp.where(big, math.pi / 2.0, jnp.where(mid, math.pi / 4.0, 0.0))
    z = xr * xr
    poly = (((8.05374449538e-2 * z - 1.38776856032e-1) * z
             + 1.99777106478e-1) * z - 3.33329491539e-1) * z * xr + xr
    return s * (y0 + poly)


def _round_up(x, m):
    return ((x + m - 1) // m) * m


# ----------------------------------- kernel ----------------------------------------

def _localnet_kernel(x_ref, w1_ref, b1_ref, w2_ref, b2_ref, o_ref, *, NB, Wp, L1, L2):
    """NB images per grid step, channel-major, one MXU matmul per conv.

    Geometry (flat indices on the wrap-padded (Hp=H+8, Wp=W+8) grid, halo of 4):
      x_ref : (NB, Cin_p, Lx)  channels (padded to 8) x flat spatial with leading
              4-elem zero halo and zero tail padding to the 128-aligned Lx.
      conv1 is computed for L1 (>= L2 + 4*Wp + 4, 128-aligned) flat positions per image,
      conv2 for L2 (>= H*Wp, 128-aligned) flat positions per image.
      The dilation-2 tap at (dh, dw) is a lane slice starting at s = 2*dh*Wp + 2*dw;
      the nine slices are stacked on sublanes (im2col) and the NB per-image patch
      matrices are concatenated along lanes, so each conv is a single matmul.
    w1_ref: (Cmid_p, 9*Cin_p)  ; b1_ref: (Cmid_p, 1)
    w2_ref: (Cout,   9*Cmid_p) ; b2_ref: (Cout, 1)
    o_ref : (NB, Cout, L2)     lane-dense output (valid cols are 4..4+W-1 of each row).
    """
    taps = tuple(2 * dh * Wp + 2 * dw for dh in range(3) for dw in range(3))

    # conv1: single im2col matmul  (Cmid_p, 9*Cin_p) @ (9*Cin_p, NB*L1)
    mats = []
    for b in range(NB):
        xv = x_ref[b]                                                   # (Cin_p, Lx)
        mats.append(jnp.concatenate([xv[:, s:s + L1] for s in taps], axis=0))
    p1 = jnp.concatenate(mats, axis=1)                                  # (9*Cin_p, NB*L1)
    h1 = jnp.dot(w1_ref[...], p1, preferred_element_type=jnp.float32) + b1_ref[...]
    h1 = _gelu_exact(h1)                                                # (Cmid_p, NB*L1)

    # conv2: single im2col matmul  (Cout, 9*Cmid_p) @ (9*Cmid_p, NB*L2)
    mats2 = []
    for b in range(NB):
        base = b * L1
        mats2.append(jnp.concatenate(
            [h1[:, base + s: base + s + L2] for s in taps], axis=0))
    p2 = jnp.concatenate(mats2, axis=1)                                 # (9*Cmid_p, NB*L2)
    h2 = jnp.dot(w2_ref[...], p2, preferred_element_type=jnp.float32) + b2_ref[...]
    h2 = _gelu_exact(h2)                                                # (Cout, NB*L2)

    y = _atan_f32(h2) * (1.0 / (2.0 * math.pi))
    for b in range(NB):
        o_ref[b] = y[:, b * L2:(b + 1) * L2]                            # 128-aligned slices


# ----------------------------------- wrapper ----------------------------------------

def _pick_nb(N, cap):
    # Largest divisor of N that fits the VMEM budget and (when possible) leaves at
    # least 2 grid steps so both v7x TensorCores get work.
    divs = [d for d in range(1, N + 1) if N % d == 0 and d <= cap]
    good = [d for d in divs if N // d >= 2]
    return max(good) if good else max(divs)


def local_net_v7_forward(plaq_features, rect_features, w1, b1, w2, b2, *, nb=None):
    """plaq_features: (N, 2, H, W), rect_features: (N, 4, H, W)  (NCHW, like PyTorch).

    Weights are HWIO: w1 (3,3,6,12), w2 (3,3,12,12); biases (12,), (12,).
    Both convs are 3x3, dilation=2, padding=2, padding_mode='circular'.
    Returns (plaq_coeffs (N,4,H,W), rect_coeffs (N,8,H,W)).
    """
    x = jnp.concatenate([plaq_features, rect_features], axis=1).astype(jnp.float32)  # (N,6,H,W)
    N, Cin, H, W = x.shape
    Cmid = w1.shape[-1]
    Cout = w2.shape[-1]
    Cin_p = _round_up(Cin, 8)
    Cmid_p = _round_up(Cmid, 8)

    Hp, Wp = H + 8, W + 8          # circular halo of 4 covers both dilation-2 convs
    P = Hp * Wp
    L2v = H * Wp                   # valid conv2 flat positions (full padded width rows)
    L2 = _round_up(L2v, 128)       # lane-aligned conv2 slab
    L1 = _round_up(4 * Wp + 4 + L2, 128)   # conv1 slab: covers all conv2 tap slices, aligned
    Lx = _round_up(4 * Wp + 4 + L1, 128)   # input slab: covers all conv1 tap slices, aligned
    # (Lx >= P + 8 automatically, so the 4-elem leading zero halo + tail pad fits.)

    # Circular ("wrap") spatial pad, flatten spatial, then ONE zero-pad combining the
    # channel padding, the leading 4-elem flat halo and the lane-alignment tail.
    xpad = jnp.pad(x, ((0, 0), (0, 0), (4, 4), (4, 4)), mode="wrap")   # (N, Cin, Hp, Wp)
    xflat = xpad.reshape(N, Cin, P)
    xbig = jnp.pad(xflat, ((0, 0), (0, Cin_p - Cin), (4, Lx - P - 4)))  # (N, Cin_p, Lx)

    # Channel-major im2col weights: row = out-channel, col = tap*C_pad + in-channel.
    w1m = jnp.transpose(w1, (3, 0, 1, 2))                              # (Cmid, 3, 3, Cin)
    w1m = jnp.pad(w1m, ((0, Cmid_p - Cmid), (0, 0), (0, 0), (0, Cin_p - Cin)))
    w1m = w1m.reshape(Cmid_p, 9 * Cin_p)
    b1c = jnp.pad(b1, (0, Cmid_p - Cmid)).reshape(Cmid_p, 1)

    w2m = jnp.transpose(w2, (3, 0, 1, 2))                              # (Cout, 3, 3, Cmid)
    w2m = jnp.pad(w2m, ((0, 0), (0, 0), (0, 0), (0, Cmid_p - Cmid)))
    w2m = w2m.reshape(Cout, 9 * Cmid_p)
    b2c = b2.reshape(Cout, 1)

    # Batch NB images per grid step: conservative ~12 MiB working-set budget so the
    # same choice is safe on v7x (64 MiB VMEM) and v5e/v6e (128 MiB).
    per_image_bytes = 4 * (Cin_p * Lx + 9 * Cin_p * L1 + Cmid_p * L1
                           + 9 * Cmid_p * L2 + 2 * Cout * L2)
    nb_cap = max(1, (12 * 1024 * 1024) // per_image_bytes)
    if nb is None:
        nb = _pick_nb(N, nb_cap)
    assert N % nb == 0, (N, nb)

    kernel = functools.partial(_localnet_kernel, NB=nb, Wp=Wp, L1=L1, L2=L2)

    out = pl.pallas_call(
        kernel,
        out_shape=jax.ShapeDtypeStruct((N, Cout, L2), jnp.float32),
        grid_spec=pltpu.PrefetchScalarGridSpec(
            num_scalar_prefetch=0,
            grid=(N // nb,),
            in_specs=[
                pl.BlockSpec((nb, Cin_p, Lx), lambda n: (n, 0, 0)),
                pl.BlockSpec((Cmid_p, 9 * Cin_p), lambda n: (0, 0)),
                pl.BlockSpec((Cmid_p, 1), lambda n: (0, 0)),
                pl.BlockSpec((Cout, 9 * Cmid_p), lambda n: (0, 0)),
                pl.BlockSpec((Cout, 1), lambda n: (0, 0)),
            ],
            out_specs=pl.BlockSpec((nb, Cout, L2), lambda n: (n, 0, 0)),
        ),
        compiler_params=pltpu.CompilerParams(
            dimension_semantics=("parallel",)),
    )(xbig, w1m, b1c, w2m, b2c)

    # (N, Cout, L2) -> drop lane-alignment tail -> (N, Cout, H, Wp) -> crop halo columns.
    out = out[:, :, :L2v].reshape(N, Cout, H, Wp)[:, :, :, 4:4 + W]
    return out[:, :4, :, :], out[:, 4:, :, :]


# ------------------------------- pure-JAX reference ---------------------------------

def _reference(plaq, rect, w1, b1, w2, b2):
    x = jnp.concatenate([plaq, rect], axis=1).astype(jnp.float32)      # (N, C, H, W)

    def circ_conv_d2(x, w, b):
        xp = jnp.pad(x, ((0, 0), (0, 0), (2, 2), (2, 2)), mode="wrap")
        y = jax.lax.conv_general_dilated(
            xp, w, window_strides=(1, 1), padding="VALID",
            rhs_dilation=(2, 2),
            dimension_numbers=("NCHW", "HWIO", "NCHW"),
            precision=jax.lax.Precision.HIGHEST)
        return y + b[None, :, None, None]

    h = jax.nn.gelu(circ_conv_d2(x, w1, b1), approximate=False)
    h = jax.nn.gelu(circ_conv_d2(h, w2, b2), approximate=False)
    h = jnp.arctan(h) / jnp.pi / 2.0
    return h[:, :4, :, :], h[:, 4:, :, :]


# ------------------------------------- main ------------------------------------------

if __name__ == "__main__":
    key = jax.random.PRNGKey(0)
    kp, kr, k1, k2, k3, k4 = jax.random.split(key, 6)

    # N=4 exercises the batched (NB=2, grid=2) path and keeps both v7x TCs busy.
    N, H, W = 4, 16, 16
    cin, cmid, cout = 6, 12, 12    # LocalNetv7: (2+4) -> 2*(2+4)=12 -> 4+8=12

    plaq = jax.random.normal(kp, (N, 2, H, W), jnp.float32)
    rect = jax.random.normal(kr, (N, 4, H, W), jnp.float32)

    # Deterministic parameter init (Conv2d-style uniform bounds), stored HWIO.
    lim1 = 1.0 / math.sqrt(cin * 9)
    lim2 = 1.0 / math.sqrt(cmid * 9)
    w1 = jax.random.uniform(k1, (3, 3, cin, cmid), jnp.float32, -lim1, lim1)
    b1 = jax.random.uniform(k2, (cmid,), jnp.float32, -lim1, lim1)
    w2 = jax.random.uniform(k3, (3, 3, cmid, cout), jnp.float32, -lim2, lim2)
    b2 = jax.random.uniform(k4, (cout,), jnp.float32, -lim2, lim2)

    plaq_c, rect_c = local_net_v7_forward(plaq, rect, w1, b1, w2, b2)
    jax.block_until_ready((plaq_c, rect_c))

    assert plaq_c.shape == (N, 4, H, W), plaq_c.shape
    assert rect_c.shape == (N, 8, H, W), rect_c.shape

    ref_p, ref_r = _reference(plaq, rect, w1, b1, w2, b2)
    err = max(float(jnp.max(jnp.abs(plaq_c - ref_p))),
              float(jnp.max(jnp.abs(rect_c - ref_r))))
    # Tolerance covers the A&S erf / Cephes atan approximations plus approx-reciprocal (EUP).
    assert err < 3e-3, f"max abs error vs reference: {err}"

    print("KERNEL_OK")
</pallas_src>

<mosaic_0001>
module attributes {stable_mosaic.version = 11 : i64} {
  func.func @_localnet_kernel(%arg0: i32, %arg1: memref<2x8x640xf32, #tpu.memory_space<vmem>>, %arg2: memref<16x72xf32, #tpu.memory_space<vmem>>, %arg3: memref<16x1xf32, #tpu.memory_space<vmem>>, %arg4: memref<12x144xf32, #tpu.memory_space<vmem>>, %arg5: memref<12x1xf32, #tpu.memory_space<vmem>>, %arg6: memref<2x12x384xf32, #tpu.memory_space<vmem>>) attributes {dimension_semantics = [#tpu.dimension_semantics<parallel>], iteration_bounds = array<i64: 2>, scalar_prefetch = 0 : i64, scratch_operands = 0 : i64, tpu.core_type = #tpu.core_type<tc>, window_params = [{transform_indices = @transform_0, window_bounds = array<i64: 2, 8, 640>}, {pipeline_mode = #tpu.pipeline_mode<synchronous>, transform_indices = @transform_1, window_bounds = array<i64: 16, 72>}, {pipeline_mode = #tpu.pipeline_mode<synchronous>, transform_indices = @transform_2, window_bounds = array<i64: 16, 1>}, {pipeline_mode = #tpu.pipeline_mode<synchronous>, transform_indices = @transform_3, window_bounds = array<i64: 12, 144>}, {pipeline_mode = #tpu.pipeline_mode<synchronous>, transform_indices = @transform_4, window_bounds = array<i64: 12, 1>}, {transform_indices = @transform_5, window_bounds = array<i64: 2, 12, 384>}]} {
    %c0 = arith.constant 0 : index
    %c0_0 = arith.constant 0 : index
    %c0_1 = arith.constant 0 : index
    %0 = vector.load %arg1[%c0, %c0_0, %c0_1] : memref<2x8x640xf32, #tpu.memory_space<vmem>>, vector<1x8x640xf32>
    %1 = vector.shape_cast %0 : vector<1x8x640xf32> to vector<8x640xf32>
    %2 = vector.extract_strided_slice %1 {offsets = [0, 0], sizes = [8, 512], strides = [1, 1]} : vector<8x640xf32> to vector<8x512xf32>
    %3 = vector.extract_strided_slice %1 {offsets = [0, 2], sizes = [8, 512], strides = [1, 1]} : vector<8x640xf32> to vector<8x512xf32>
    %4 = vector.extract_strided_slice %1 {offsets = [0, 4], sizes = [8, 512], strides = [1, 1]} : vector<8x640xf32> to vector<8x512xf32>
    %5 = vector.extract_strided_slice %1 {offsets = [0, 48], sizes = [8, 512], strides = [1, 1]} : vector<8x640xf32> to vector<8x512xf32>
    %6 = vector.extract_strided_slice %1 {offsets = [0, 50], sizes = [8, 512], strides = [1, 1]} : vector<8x640xf32> to vector<8x512xf32>
    %7 = vector.extract_strided_slice %1 {offsets = [0, 52], sizes = [8, 512], strides = [1, 1]} : vector<8x640xf32> to vector<8x512xf32>
    %8 = vector.extract_strided_slice %1 {offsets = [0, 96], sizes = [8, 512], strides = [1, 1]} : vector<8x640xf32> to vector<8x512xf32>
    %9 = vector.extract_strided_slice %1 {offsets = [0, 98], sizes = [8, 512], strides = [1, 1]} : vector<8x640xf32> to vector<8x512xf32>
    %10 = vector.extract_strided_slice %1 {offsets = [0, 100], sizes = [8, 512], strides = [1, 1]} : vector<8x640xf32> to vector<8x512xf32>
    %11 = tpu.concatenate %2, %3, %4, %5, %6, %7, %8, %9, %10 in 0 : vector<8x512xf32>, vector<8x512xf32>, vector<8x512xf32>, vector<8x512xf32>, vector<8x512xf32>, vector<8x512xf32>, vector<8x512xf32>, vector<8x512xf32>, vector<8x512xf32> -> vector<72x512xf32>
    %c1 = arith.constant 1 : index
    %c0_2 = arith.constant 0 : index
    %c0_3 = arith.constant 0 : index
    %12 = vector.load %arg1[%c1, %c0_2, %c0_3] : memref<2x8x640xf32, #tpu.memory_space<vmem>>, vector<1x8x640xf32>
    %13 = vector.shape_cast %12 : vector<1x8x640xf32> to vector<8x640xf32>
    %14 = vector.extract_strided_slice %13 {offsets = [0, 0], sizes = [8, 512], strides = [1, 1]} : vector<8x640xf32> to vector<8x512xf32>
    %15 = vector.extract_strided_slice %13 {offsets = [0, 2], sizes = [8, 512], strides = [1, 1]} : vector<8x640xf32> to vector<8x512xf32>
    %16 = vector.extract_strided_slice %13 {offsets = [0, 4], sizes = [8, 512], strides = [1, 1]} : vector<8x640xf32> to vector<8x512xf32>
    %17 = vector.extract_strided_slice %13 {offsets = [0, 48], sizes = [8, 512], strides = [1, 1]} : vector<8x640xf32> to vector<8x512xf32>
    %18 = vector.extract_strided_slice %13 {offsets = [0, 50], sizes = [8, 512], strides = [1, 1]} : vector<8x640xf32> to vector<8x512xf32>
    %19 = vector.extract_strided_slice %13 {offsets = [0, 52], sizes = [8, 512], strides = [1, 1]} : vector<8x640xf32> to vector<8x512xf32>
    %20 = vector.extract_strided_slice %13 {offsets = [0, 96], sizes = [8, 512], strides = [1, 1]} : vector<8x640xf32> to vector<8x512xf32>
    %21 = vector.extract_strided_slice %13 {offsets = [0, 98], sizes = [8, 512], strides = [1, 1]} : vector<8x640xf32> to vector<8x512xf32>
    %22 = vector.extract_strided_slice %13 {offsets = [0, 100], sizes = [8, 512], strides = [1, 1]} : vector<8x640xf32> to vector<8x512xf32>
    %23 = tpu.concatenate %14, %15, %16, %17, %18, %19, %20, %21, %22 in 0 : vector<8x512xf32>, vector<8x512xf32>, vector<8x512xf32>, vector<8x512xf32>, vector<8x512xf32>, vector<8x512xf32>, vector<8x512xf32>, vector<8x512xf32>, vector<8x512xf32> -> vector<72x512xf32>
    %24 = tpu.concatenate %11, %23 in 1 : vector<72x512xf32>, vector<72x512xf32> -> vector<72x1024xf32>
    %c0_4 = arith.constant 0 : index
    %c0_5 = arith.constant 0 : index
    %25 = vector.load %arg2[%c0_4, %c0_5] : memref<16x72xf32, #tpu.memory_space<vmem>>, vector<16x72xf32>
    %cst = arith.constant dense<0.000000e+00> : vector<16x1024xf32>
    %26 = tpu.matmul %25, %24, %cst {dimension_numbers = #tpu.dot_dimension_numbers<[1], [0], [0], [1], [0, 0, 1, 1], [], []>} : vector<16x72xf32>, vector<72x1024xf32>, vector<16x1024xf32> -> vector<16x1024xf32>
    %c0_6 = arith.constant 0 : index
    %c0_7 = arith.constant 0 : index
    %27 = vector.load %arg3[%c0_6, %c0_7] : memref<16x1xf32, #tpu.memory_space<vmem>>, vector<16x1xf32>
    %28 = vector.broadcast %27 : vector<16x1xf32> to vector<16x1024xf32>
    %29 = arith.addf %26, %28 : vector<16x1024xf32>
    %cst_8 = arith.constant 5.000000e-01 : f32
    %30 = vector.broadcast %cst_8 : f32 to vector<16x1024xf32>
    %31 = arith.mulf %30, %29 : vector<16x1024xf32>
    %cst_9 = arith.constant 0.707106769 : f32
    %32 = vector.broadcast %cst_9 : f32 to vector<16x1024xf32>
    %33 = arith.mulf %29, %32 : vector<16x1024xf32>
    %cst_10 = arith.constant 0.000000e+00 : f32
    %34 = vector.broadcast %cst_10 : f32 to vector<16x1024xf32>
    %35 = arith.cmpf olt, %33, %34 : vector<16x1024xf32>
    %cst_11 = arith.constant -1.000000e+00 : f32
    %cst_12 = arith.constant 1.000000e+00 : f32
    %36 = vector.broadcast %cst_11 : f32 to vector<16x1024xf32>
    %37 = vector.broadcast %cst_12 : f32 to vector<16x1024xf32>
    %38 = arith.select %35, %36, %37 : vector<16x1024xi1>, vector<16x1024xf32>
    %39 = math.absf %33 : vector<16x1024xf32>
    %cst_13 = arith.constant 0.327591091 : f32
    %40 = vector.broadcast %cst_13 : f32 to vector<16x1024xf32>
    %41 = arith.mulf %40, %39 : vector<16x1024xf32>
    %cst_14 = arith.constant 1.000000e+00 : f32
    %42 = vector.broadcast %cst_14 : f32 to vector<16x1024xf32>
    %43 = arith.addf %42, %41 : vector<16x1024xf32>
    %44 = tpu.reciprocal %43 {approx = true} : vector<16x1024xf32> -> vector<16x1024xf32>
    %cst_15 = arith.constant 1.06140542 : f32
    %45 = vector.broadcast %cst_15 : f32 to vector<16x1024xf32>
    %46 = arith.mulf %45, %44 : vector<16x1024xf32>
    %cst_16 = arith.constant -1.45315206 : f32
    %47 = vector.broadcast %cst_16 : f32 to vector<16x1024xf32>
    %48 = arith.addf %46, %47 : vector<16x1024xf32>
    %49 = arith.mulf %48, %44 : vector<16x1024xf32>
    %cst_17 = arith.constant 1.42141378 : f32
    %50 = vector.broadcast %cst_17 : f32 to vector<16x1024xf32>
    %51 = arith.addf %49, %50 : vector<16x1024xf32>
    %52 = arith.mulf %51, %44 : vector<16x1024xf32>
    %cst_18 = arith.constant -0.284496725 : f32
    %53 = vector.broadcast %cst_18 : f32 to vector<16x1024xf32>
    %54 = arith.addf %52, %53 : vector<16x1024xf32>
    %55 = arith.mulf %54, %44 : vector<16x1024xf32>
    %cst_19 = arith.constant 0.254829586 : f32
    %56 = vector.broadcast %cst_19 : f32 to vector<16x1024xf32>
    %57 = arith.addf %55, %56 : vector<16x1024xf32>
    %58 = arith.mulf %57, %44 : vector<16x1024xf32>
    %cst_20 = arith.constant 0.000000e+00 : f32
    %59 = vector.broadcast %cst_20 : f32 to vector<16x1024xf32>
    %60 = arith.subf %59, %39 : vector<16x1024xf32>
    %61 = arith.mulf %60, %39 : vector<16x1024xf32>
    %62 = math.exp %61 : vector<16x1024xf32>
    %63 = arith.mulf %58, %62 : vector<16x1024xf32>
    %cst_21 = arith.constant 1.000000e+00 : f32
    %64 = vector.broadcast %cst_21 : f32 to vector<16x1024xf32>
    %65 = arith.subf %64, %63 : vector<16x1024xf32>
    %66 = arith.mulf %38, %65 : vector<16x1024xf32>
    %cst_22 = arith.constant 1.000000e+00 : f32
    %67 = vector.broadcast %cst_22 : f32 to vector<16x1024xf32>
    %68 = arith.addf %67, %66 : vector<16x1024xf32>
    %69 = arith.mulf %31, %68 : vector<16x1024xf32>
    %70 = vector.extract_strided_slice %69 {offsets = [0, 0], sizes = [16, 384], strides = [1, 1]} : vector<16x1024xf32> to vector<16x384xf32>
    %71 = vector.extract_strided_slice %69 {offsets = [0, 2], sizes = [16, 384], strides = [1, 1]} : vector<16x1024xf32> to vector<16x384xf32>
    %72 = vector.extract_strided_slice %69 {offsets = [0, 4], sizes = [16, 384], strides = [1, 1]} : vector<16x1024xf32> to vector<16x384xf32>
    %73 = vector.extract_strided_slice %69 {offsets = [0, 48], sizes = [16, 384], strides = [1, 1]} : vector<16x1024xf32> to vector<16x384xf32>
    %74 = vector.extract_strided_slice %69 {offsets = [0, 50], sizes = [16, 384], strides = [1, 1]} : vector<16x1024xf32> to vector<16x384xf32>
    %75 = vector.extract_strided_slice %69 {offsets = [0, 52], sizes = [16, 384], strides = [1, 1]} : vector<16x1024xf32> to vector<16x384xf32>
    %76 = vector.extract_strided_slice %69 {offsets = [0, 96], sizes = [16, 384], strides = [1, 1]} : vector<16x1024xf32> to vector<16x384xf32>
    %77 = vector.extract_strided_slice %69 {offsets = [0, 98], sizes = [16, 384], strides = [1, 1]} : vector<16x1024xf32> to vector<16x384xf32>
    %78 = vector.extract_strided_slice %69 {offsets = [0, 100], sizes = [16, 384], strides = [1, 1]} : vector<16x1024xf32> to vector<16x384xf32>
    %79 = tpu.concatenate %70, %71, %72, %73, %74, %75, %76, %77, %78 in 0 : vector<16x384xf32>, vector<16x384xf32>, vector<16x384xf32>, vector<16x384xf32>, vector<16x384xf32>, vector<16x384xf32>, vector<16x384xf32>, vector<16x384xf32>, vector<16x384xf32> -> vector<144x384xf32>
    %80 = vector.extract_strided_slice %69 {offsets = [0, 512], sizes = [16, 384], strides = [1, 1]} : vector<16x1024xf32> to vector<16x384xf32>
    %81 = vector.extract_strided_slice %69 {offsets = [0, 514], sizes = [16, 384], strides = [1, 1]} : vector<16x1024xf32> to vector<16x384xf32>
    %82 = vector.extract_strided_slice %69 {offsets = [0, 516], sizes = [16, 384], strides = [1, 1]} : vector<16x1024xf32> to vector<16x384xf32>
    %83 = vector.extract_strided_slice %69 {offsets = [0, 560], sizes = [16, 384], strides = [1, 1]} : vector<16x1024xf32> to vector<16x384xf32>
    %84 = vector.extract_strided_slice %69 {offsets = [0, 562], sizes = [16, 384], strides = [1, 1]} : vector<16x1024xf32> to vector<16x384xf32>
    %85 = vector.extract_strided_slice %69 {offsets = [0, 564], sizes = [16, 384], strides = [1, 1]} : vector<16x1024xf32> to vector<16x384xf32>
    %86 = vector.extract_strided_slice %69 {offsets = [0, 608], sizes = [16, 384], strides = [1, 1]} : vector<16x1024xf32> to vector<16x384xf32>
    %87 = vector.extract_strided_slice %69 {offsets = [0, 610], sizes = [16, 384], strides = [1, 1]} : vector<16x1024xf32> to vector<16x384xf32>
    %88 = vector.extract_strided_slice %69 {offsets = [0, 612], sizes = [16, 384], strides = [1, 1]} : vector<16x1024xf32> to vector<16x384xf32>
    %89 = tpu.concatenate %80, %81, %82, %83, %84, %85, %86, %87, %88 in 0 : vector<16x384xf32>, vector<16x384xf32>, vector<16x384xf32>, vector<16x384xf32>, vector<16x384xf32>, vector<16x384xf32>, vector<16x384xf32>, vector<16x384xf32>, vector<16x384xf32> -> vector<144x384xf32>
    %90 = tpu.concatenate %79, %89 in 1 : vector<144x384xf32>, vector<144x384xf32> -> vector<144x768xf32>
    %c0_23 = arith.constant 0 : index
    %c0_24 = arith.constant 0 : index
    %91 = vector.load %arg4[%c0_23, %c0_24] : memref<12x144xf32, #tpu.memory_space<vmem>>, vector<12x144xf32>
    %cst_25 = arith.constant dense<0.000000e+00> : vector<12x768xf32>
    %92 = tpu.matmul %91, %90, %cst_25 {dimension_numbers = #tpu.dot_dimension_numbers<[1], [0], [0], [1], [0, 0, 1, 1], [], []>} : vector<12x144xf32>, vector<144x768xf32>, vector<12x768xf32> -> vector<12x768xf32>
    %c0_26 = arith.constant 0 : index
    %c0_27 = arith.constant 0 : index
    %93 = vector.load %arg5[%c0_26, %c0_27] : memref<12x1xf32, #tpu.memory_space<vmem>>, vector<12x1xf32>
    %94 = vector.broadcast %93 : vector<12x1xf32> to vector<12x768xf32>
    %95 = arith.addf %92, %94 : vector<12x768xf32>
    %cst_28 = arith.constant 5.000000e-01 : f32
    %96 = vector.broadcast %cst_28 : f32 to vector<12x768xf32>
    %97 = arith.mulf %96, %95 : vector<12x768xf32>
    %cst_29 = arith.constant 0.707106769 : f32
    %98 = vector.broadcast %cst_29 : f32 to vector<12x768xf32>
    %99 = arith.mulf %95, %98 : vector<12x768xf32>
    %cst_30 = arith.constant 0.000000e+00 : f32
    %100 = vector.broadcast %cst_30 : f32 to vector<12x768xf32>
    %101 = arith.cmpf olt, %99, %100 : vector<12x768xf32>
    %cst_31 = arith.constant -1.000000e+00 : f32
    %cst_32 = arith.constant 1.000000e+00 : f32
    %102 = vector.broadcast %cst_31 : f32 to vector<12x768xf32>
    %103 = vector.broadcast %cst_32 : f32 to vector<12x768xf32>
    %104 = arith.select %101, %102, %103 : vector<12x768xi1>, vector<12x768xf32>
    %105 = math.absf %99 : vector<12x768xf32>
    %cst_33 = arith.constant 0.327591091 : f32
    %106 = vector.broadcast %cst_33 : f32 to vector<12x768xf32>
    %107 = arith.mulf %106, %105 : vector<12x768xf32>
    %cst_34 = arith.constant 1.000000e+00 : f32
    %108 = vector.broadcast %cst_34 : f32 to vector<12x768xf32>
    %109 = arith.addf %108, %107 : vector<12x768xf32>
    %110 = tpu.reciprocal %109 {approx = true} : vector<12x768xf32> -> vector<12x768xf32>
    %cst_35 = arith.constant 1.06140542 : f32
    %111 = vector.broadcast %cst_35 : f32 to vector<12x768xf32>
    %112 = arith.mulf %111, %110 : vector<12x768xf32>
    %cst_36 = arith.constant -1.45315206 : f32
    %113 = vector.broadcast %cst_36 : f32 to vector<12x768xf32>
    %114 = arith.addf %112, %113 : vector<12x768xf32>
    %115 = arith.mulf %114, %110 : vector<12x768xf32>
    %cst_37 = arith.constant 1.42141378 : f32
    %116 = vector.broadcast %cst_37 : f32 to vector<12x768xf32>
    %117 = arith.addf %115, %116 : vector<12x768xf32>
    %118 = arith.mulf %117, %110 : vector<12x768xf32>
    %cst_38 = arith.constant -0.284496725 : f32
    %119 = vector.broadcast %cst_38 : f32 to vector<12x768xf32>
    %120 = arith.addf %118, %119 : vector<12x768xf32>
    %121 = arith.mulf %120, %110 : vector<12x768xf32>
    %cst_39 = arith.constant 0.254829586 : f32
    %122 = vector.broadcast %cst_39 : f32 to vector<12x768xf32>
    %123 = arith.addf %121, %122 : vector<12x768xf32>
    %124 = arith.mulf %123, %110 : vector<12x768xf32>
    %cst_40 = arith.constant 0.000000e+00 : f32
    %125 = vector.broadcast %cst_40 : f32 to vector<12x768xf32>
    %126 = arith.subf %125, %105 : vector<12x768xf32>
    %127 = arith.mulf %126, %105 : vector<12x768xf32>
    %128 = math.exp %127 : vector<12x768xf32>
    %129 = arith.mulf %124, %128 : vector<12x768xf32>
    %cst_41 = arith.constant 1.000000e+00 : f32
    %130 = vector.broadcast %cst_41 : f32 to vector<12x768xf32>
    %131 = arith.subf %130, %129 : vector<12x768xf32>
    %132 = arith.mulf %104, %131 : vector<12x768xf32>
    %cst_42 = arith.constant 1.000000e+00 : f32
    %133 = vector.broadcast %cst_42 : f32 to vector<12x768xf32>
    %134 = arith.addf %133, %132 : vector<12x768xf32>
    %135 = arith.mulf %97, %134 : vector<12x768xf32>
    %cst_43 = arith.constant 0.000000e+00 : f32
    %136 = vector.broadcast %cst_43 : f32 to vector<12x768xf32>
    %137 = arith.cmpf olt, %135, %136 : vector<12x768xf32>
    %cst_44 = arith.constant -1.000000e+00 : f32
    %cst_45 = arith.constant 1.000000e+00 : f32
    %138 = vector.broadcast %cst_44 : f32 to vector<12x768xf32>
    %139 = vector.broadcast %cst_45 : f32 to vector<12x768xf32>
    %140 = arith.select %137, %138, %139 : vector<12x768xi1>, vector<12x768xf32>
    %141 = math.absf %135 : vector<12x768xf32>
    %cst_46 = arith.constant 2.41421366 : f32
    %142 = vector.broadcast %cst_46 : f32 to vector<12x768xf32>
    %143 = arith.cmpf ogt, %141, %142 : vector<12x768xf32>
    %cst_47 = arith.constant 0.414213568 : f32
    %144 = vector.broadcast %cst_47 : f32 to vector<12x768xf32>
    %145 = arith.cmpf ogt, %141, %144 : vector<12x768xf32>
    %cst_48 = arith.constant dense<true> : vector<12x768xi1>
    %146 = arith.xori %143, %cst_48 : vector<12x768xi1>
    %147 = arith.andi %145, %146 : vector<12x768xi1>
    %cst_49 = arith.constant 1.000000e+00 : f32
    %148 = vector.broadcast %cst_49 : f32 to vector<12x768xf32>
    %149 = arith.addf %141, %148 : vector<12x768xf32>
    %cst_50 = arith.constant 1.000000e+00 : f32
    %150 = vector.broadcast %cst_50 : f32 to vector<12x768xf32>
    %151 = arith.select %147, %149, %150 : vector<12x768xi1>, vector<12x768xf32>
    %152 = arith.select %143, %141, %151 : vector<12x768xi1>, vector<12x768xf32>
    %153 = tpu.reciprocal %152 {approx = true} : vector<12x768xf32> -> vector<12x768xf32>
    %cst_51 = arith.constant 0.000000e+00 : f32
    %154 = vector.broadcast %cst_51 : f32 to vector<12x768xf32>
    %155 = arith.subf %154, %153 : vector<12x768xf32>
    %cst_52 = arith.constant 1.000000e+00 : f32
    %156 = vector.broadcast %cst_52 : f32 to vector<12x768xf32>
    %157 = arith.subf %141, %156 : vector<12x768xf32>
    %158 = arith.mulf %157, %153 : vector<12x768xf32>
    %159 = arith.select %147, %158, %141 : vector<12x768xi1>, vector<12x768xf32>
    %160 = arith.select %143, %155, %159 : vector<12x768xi1>, vector<12x768xf32>
    %cst_53 = arith.constant 0.785398185 : f32
    %cst_54 = arith.constant 0.000000e+00 : f32
    %161 = vector.broadcast %cst_53 : f32 to vector<12x768xf32>
    %162 = vector.broadcast %cst_54 : f32 to vector<12x768xf32>
    %163 = arith.select %147, %161, %162 : vector<12x768xi1>, vector<12x768xf32>
    %cst_55 = arith.constant 1.57079637 : f32
    %164 = vector.broadcast %cst_55 : f32 to vector<12x768xf32>
    %165 = arith.select %143, %164, %163 : vector<12x768xi1>, vector<12x768xf32>
    %166 = arith.mulf %160, %160 : vector<12x768xf32>
    %cst_56 = arith.constant 0.0805374458 : f32
    %167 = vector.broadcast %cst_56 : f32 to vector<12x768xf32>
    %168 = arith.mulf %167, %166 : vector<12x768xf32>
    %cst_57 = arith.constant 0.138776854 : f32
    %169 = vector.broadcast %cst_57 : f32 to vector<12x768xf32>
    %170 = arith.subf %168, %169 : vector<12x768xf32>
    %171 = arith.mulf %170, %166 : vector<12x768xf32>
    %cst_58 = arith.constant 0.199777111 : f32
    %172 = vector.broadcast %cst_58 : f32 to vector<12x768xf32>
    %173 = arith.addf %171, %172 : vector<12x768xf32>
    %174 = arith.mulf %173, %166 : vector<12x768xf32>
    %cst_59 = arith.constant 0.333329499 : f32
    %175 = vector.broadcast %cst_59 : f32 to vector<12x768xf32>
    %176 = arith.subf %174, %175 : vector<12x768xf32>
    %177 = arith.mulf %176, %166 : vector<12x768xf32>
    %178 = arith.mulf %177, %160 : vector<12x768xf32>
    %179 = arith.addf %178, %160 : vector<12x768xf32>
    %180 = arith.addf %165, %179 : vector<12x768xf32>
    %181 = arith.mulf %140, %180 : vector<12x768xf32>
    %cst_60 = arith.constant 0.159154937 : f32
    %182 = vector.broadcast %cst_60 : f32 to vector<12x768xf32>
    %183 = arith.mulf %181, %182 : vector<12x768xf32>
    %184 = vector.extract_strided_slice %183 {offsets = [0, 0], sizes = [12, 384], strides = [1, 1]} : vector<12x768xf32> to vector<12x384xf32>
    %c0_61 = arith.constant 0 : index
    %c0_62 = arith.constant 0 : index
    %c0_63 = arith.constant 0 : index
    %185 = vector.load %arg6[%c0_61, %c0_62, %c0_63] : memref<2x12x384xf32, #tpu.memory_space<vmem>>, vector<1x12x384xf32>
    %186 = vector.shape_cast %185 : vector<1x12x384xf32> to vector<12x384xf32>
    %187 = vector.shape_cast %184 : vector<12x384xf32> to vector<1x12x384xf32>
    tpu.vector_store %arg6[%c0_61, %c0_62, %c0_63], %187 {strides = array<i32>} : memref<2x12x384xf32, #tpu.memory_space<vmem>>, vector<1x12x384xf32>,
    %188 = vector.extract_strided_slice %183 {offsets = [0, 384], sizes = [12, 384], strides = [1, 1]} : vector<12x768xf32> to vector<12x384xf32>
    %c1_64 = arith.constant 1 : index
    %c0_65 = arith.constant 0 : index
    %c0_66 = arith.constant 0 : index
    %189 = vector.load %arg6[%c1_64, %c0_65, %c0_66] : memref<2x12x384xf32, #tpu.memory_space<vmem>>, vector<1x12x384xf32>
    %190 = vector.shape_cast %189 : vector<1x12x384xf32> to vector<12x384xf32>
    %191 = vector.shape_cast %188 : vector<12x384xf32> to vector<1x12x384xf32>
    tpu.vector_store %arg6[%c1_64, %c0_65, %c0_66], %191 {strides = array<i32>} : memref<2x12x384xf32, #tpu.memory_space<vmem>>, vector<1x12x384xf32>,
    return
  }
  func.func @transform_0(%arg0: i32) -> (i32, i32, i32) {
    %c0_i32 = arith.constant 0 : i32
    %c0_i32_0 = arith.constant 0 : i32
    %c0_i32_1 = arith.constant 0 : i32
    return %arg0, %c0_i32, %c0_i32_0 : i32, i32, i32
  }
  func.func @transform_1(%arg0: i32) -> (i32, i32) {
    %c0_i32 = arith.constant 0 : i32
    %c0_i32_0 = arith.constant 0 : i32
    %c0_i32_1 = arith.constant 0 : i32
    return %c0_i32, %c0_i32_0 : i32, i32
  }
  func.func @transform_2(%arg0: i32) -> (i32, i32) {
    %c0_i32 = arith.constant 0 : i32
    %c0_i32_0 = arith.constant 0 : i32
    %c0_i32_1 = arith.constant 0 : i32
    return %c0_i32, %c0_i32_0 : i32, i32
  }
  func.func @transform_3(%arg0: i32) -> (i32, i32) {
    %c0_i32 = arith.constant 0 : i32
    %c0_i32_0 = arith.constant 0 : i32
    %c0_i32_1 = arith.constant 0 : i32
    return %c0_i32, %c0_i32_0 : i32, i32
  }
  func.func @transform_4(%arg0: i32) -> (i32, i32) {
    %c0_i32 = arith.constant 0 : i32
    %c0_i32_0 = arith.constant 0 : i32
    %c0_i32_1 = arith.constant 0 : i32
    return %c0_i32, %c0_i32_0 : i32, i32
  }
  func.func @transform_5(%arg0: i32) -> (i32, i32, i32) {
    %c0_i32 = arith.constant 0 : i32
    %c0_i32_0 = arith.constant 0 : i32
    %c0_i32_1 = arith.constant 0 : i32
    return %arg0, %c0_i32, %c0_i32_0 : i32, i32, i32
  }
}

</mosaic_0001>

<llo_original>
// kernel: tpu_custom_call.1
$region0: #{tpu_custom_call.1}
  #allocation0 [shape = 'u32[]', space=smem, size = 0x4, offset = 0x4, fixed_abs, tag = 'smem constant byte address 0x4 - core index']
  #allocation1 [shape = 'u32[144,128]{1,0:T(1,128)}', space=vmem, size = 0x12000, scoped, tag = 'internal scratch']
  %s0 = inlined_call_operand.hbm [shape: f32[4,8,640], index: 0, kind: input, shape index: {}]
  %s1 = inlined_call_operand.hbm [shape: f32[16,72], index: 1, kind: input, shape index: {}]
  %s2 = inlined_call_operand.vmem [shape: f32[16,1], index: 2, kind: input, shape index: {}]
  %s3 = inlined_call_operand.vmem [shape: f32[12,144], index: 3, kind: input, shape index: {}]
  %s4 = inlined_call_operand.vmem [shape: f32[12,1], index: 4, kind: input, shape index: {}]
  %s5 = inlined_call_operand.vmem [shape: f32[4,12,384], index: 5, kind: output, shape index: {}]
  %s6 = sld [smem:[#allocation0]]
  $region61: #{tpu_custom_call.1} parent=0
    _
  %s8 = ssub.s32 1, %s6
  %s9 = scalar_select 0, %s8, %s6
  $region1: #{tpu_custom_call.1} parent=0
    #allocation2 [shape = 'u8[81920]{0}', space=vmem, size = 0x14000, scoped, tag = 'input window, operand 0']
    #allocation3 [shape = 's32[2]{0}', space=sflag, size = 0x8, scoped, tag = 'scoped memory for tpu_custom_call.1']
    #allocation4 [shape = 'u8[8192]{0}', space=vmem, size = 0x2000, scoped, tag = 'input window, operand 1, single buffered']
    #allocation5 [shape = 's32[1]{0}', space=sflag, size = 0x4, scoped, tag = 'scoped memory for tpu_custom_call.1']
    %10 = vsyncpa [#allocation3], 0
    %s11 = scalar_lea.sflag [#allocation3], 1
    %12 = vsyncpa %s11, 0
    %13 = vsyncpa [#allocation5], 0
    loop: start=0, step=1, limit=4
    $region2: #{tpu_custom_call.1} parent=1 // loop_pre_header
      _
    $region3: #{tpu_custom_call.1} parent=1 // loop_header
      %s15 = sphi 0, %s19
      %p16 = scmp.ge.s32.totalorder %s15, 4
      %s25 = sphi 0, %s27
      %s28 = sphi 0, %s25
      %s29 = sphi 0, %s28
      %s45 = sphi 0, %s29
      %s49 = sphi 0, %s49
      %s51 = sphi 0, %s49
      %s52 = sphi 0, %s51
      %s66 = sphi 0, %s52
      %s70 = sphi 0, %s70
      %s72 = sphi 0, %s70
      %s73 = sphi 0, %s72
      %s87 = sphi 0, %s73
      %s91 = sphi 0, %s91
      %s93 = sphi 0, %s91
      %s94 = sphi 0, %s93
      %s108 = sphi 0, %s94
      %s112 = sphi 0, %s112
      %s114 = sphi 0, %s112
      %s115 = sphi 0, %s114
      %s129 = sphi 0, %s115
      %s135 = sphi 0, %s137
      %s138 = sphi 0, %s135
      %s139 = sphi 0, %s138
      %s155 = sphi 0, %s139
    $region4: #{tpu_custom_call.1} parent=1 // loop_header_branch
      %18 = sbr.rel (%p16) target = $region8
    $region5: #{tpu_custom_call.1} parent=1 // loop_body
      %s20 = ssub.s32 %s15, 1
      %s21 = ssub.s32 %s15, 2
      %s22 = sadd.s32 %s15, 1
      %s23 = ssub.s32 %s15, %s22
      %p24 = scmp.eq.s32.totalorder %s23, 0
      %s26 = sadd.s32 %s25, 1
      %s27 = scalar_select %p24, %s25, %s26
      %p30 = pneg %p24
      %p31 = scmp.eq.s32.totalorder %s15, 1
      %p32 = por %p30, %p31
      %p33 = scmp.ne.s32.totalorder %s25, %s28
      %p34 = scmp.eq.s32.totalorder %s15, 0
      %p35 = por %p33, %p34
      %p36 = scmp.ne.s32.totalorder %s25, %s28
      %p37 = scmp.eq.s32.totalorder %s20, 1
      %p38 = por %p36, %p37
      %p39 = scmp.ne.s32.totalorder %s28, %s29
      %p40 = scmp.eq.s32.totalorder %s20, 0
      %p41 = por %p39, %p40
      %p42 = scmp.ne.s32.totalorder %s28, %s29
      %p43 = scmp.eq.s32.totalorder %s21, 1
      %p44 = por %p42, %p43
      %p46 = scmp.ne.s32.totalorder %s29, %s45
      %p47 = scmp.eq.s32.totalorder %s21, 0
      %p48 = por %p46, %p47
      %s50 = sadd.s32 %s49, 1
      %p53 = scmp.eq.s32.totalorder %s15, 1
      %p54 = scmp.ne.s32.totalorder %s49, %s51
      %p55 = scmp.eq.s32.totalorder %s15, 0
      %p56 = por %p54, %p55
      %p57 = scmp.ne.s32.totalorder %s49, %s51
      %p58 = scmp.eq.s32.totalorder %s20, 1
      %p59 = por %p57, %p58
      %p60 = scmp.ne.s32.totalorder %s51, %s52
      %p61 = scmp.eq.s32.totalorder %s20, 0
      %p62 = por %p60, %p61
      %p63 = scmp.ne.s32.totalorder %s51, %s52
      %p64 = scmp.eq.s32.totalorder %s21, 1
      %p65 = por %p63, %p64
      %p67 = scmp.ne.s32.totalorder %s52, %s66
      %p68 = scmp.eq.s32.totalorder %s21, 0
      %p69 = por %p67, %p68
      %s71 = sadd.s32 %s70, 1
      %p74 = scmp.eq.s32.totalorder %s15, 1
      %p75 = scmp.ne.s32.totalorder %s70, %s72
      %p76 = scmp.eq.s32.totalorder %s15, 0
      %p77 = por %p75, %p76
      %p78 = scmp.ne.s32.totalorder %s70, %s72
      %p79 = scmp.eq.s32.totalorder %s20, 1
      %p80 = por %p78, %p79
      %p81 = scmp.ne.s32.totalorder %s72, %s73
      %p82 = scmp.eq.s32.totalorder %s20, 0
      %p83 = por %p81, %p82
      %p84 = scmp.ne.s32.totalorder %s72, %s73
      %p85 = scmp.eq.s32.totalorder %s21, 1
      %p86 = por %p84, %p85
      %p88 = scmp.ne.s32.totalorder %s73, %s87
      %p89 = scmp.eq.s32.totalorder %s21, 0
      %p90 = por %p88, %p89
      %s92 = sadd.s32 %s91, 1
      %p95 = scmp.eq.s32.totalorder %s15, 1
      %p96 = scmp.ne.s32.totalorder %s91, %s93
      %p97 = scmp.eq.s32.totalorder %s15, 0
      %p98 = por %p96, %p97
      %p99 = scmp.ne.s32.totalorder %s91, %s93
      %p100 = scmp.eq.s32.totalorder %s20, 1
      %p101 = por %p99, %p100
      %p102 = scmp.ne.s32.totalorder %s93, %s94
      %p103 = scmp.eq.s32.totalorder %s20, 0
      %p104 = por %p102, %p103
      %p105 = scmp.ne.s32.totalorder %s93, %s94
      %p106 = scmp.eq.s32.totalorder %s21, 1
      %p107 = por %p105, %p106
      %p109 = scmp.ne.s32.totalorder %s94, %s108
      %p110 = scmp.eq.s32.totalorder %s21, 0
      %p111 = por %p109, %p110
      %s113 = sadd.s32 %s112, 1
      %p116 = scmp.eq.s32.totalorder %s15, 1
      %p117 = scmp.ne.s32.totalorder %s112, %s114
      %p118 = scmp.eq.s32.totalorder %s15, 0
      %p119 = por %p117, %p118
      %p120 = scmp.ne.s32.totalorder %s112, %s114
      %p121 = scmp.eq.s32.totalorder %s20, 1
      %p122 = por %p120, %p121
      %p123 = scmp.ne.s32.totalorder %s114, %s115
      %p124 = scmp.eq.s32.totalorder %s20, 0
      %p125 = por %p123, %p124
      %p126 = scmp.ne.s32.totalorder %s114, %s115
      %p127 = scmp.eq.s32.totalorder %s21, 1
      %p128 = por %p126, %p127
      %p130 = scmp.ne.s32.totalorder %s115, %s129
      %p131 = scmp.eq.s32.totalorder %s21, 0
      %p132 = por %p130, %p131
      %s133 = ssub.s32 %s15, %s22
      %p134 = scmp.eq.s32.totalorder %s133, 0
      %s136 = sadd.s32 %s135, 1
      %s137 = scalar_select %p134, %s135, %s136
      %p140 = pneg %p134
      %p141 = scmp.eq.s32.totalorder %s15, 1
      %p142 = por %p140, %p141
      %p143 = scmp.ne.s32.totalorder %s135, %s138
      %p144 = scmp.eq.s32.totalorder %s15, 0
      %p145 = por %p143, %p144
      %p146 = scmp.ne.s32.totalorder %s135, %s138
      %p147 = scmp.eq.s32.totalorder %s20, 1
      %p148 = por %p146, %p147
      %p149 = scmp.ne.s32.totalorder %s138, %s139
      %p150 = scmp.eq.s32.totalorder %s20, 0
      %p151 = por %p149, %p150
      %p152 = scmp.ne.s32.totalorder %s138, %s139
      %p153 = scmp.eq.s32.totalorder %s21, 1
      %p154 = por %p152, %p153
      %p156 = scmp.ne.s32.totalorder %s139, %s155
      %p157 = scmp.eq.s32.totalorder %s21, 0
      %p158 = por %p156, %p157
      %p159 = scmp.le.s32.totalorder 1, %s15
      %p160 = scmp.lt.s32.totalorder %s15, 3
      %p161 = pnand %p159, %p160
      %p162 = pneg %p161
      // Predicated region
      $region9: #{tpu_custom_call.1} parent=5 // pred_check
        _
      $region10: #{tpu_custom_call.1} parent=5 // pred_check_branch
        %164 = sbr.rel (%p161) target = $region12
      $region11: #{tpu_custom_call.1} parent=5 // pred_region
        %s165 = ssub.s32 %s15, 1
        // Predicated region
        $region13: #{tpu_custom_call.1} parent=11 // pred_check
          %p166 = pneg %p62
        $region14: #{tpu_custom_call.1} parent=11 // pred_check_branch
          %168 = sbr.rel (%p166) target = $region16
        $region15: #{tpu_custom_call.1} parent=11 // pred_region
          %s170 = ssub.s32 256, 256
          %171 = vsyncadd [#allocation5], %s170
          %s172 = sshll.u32 [#allocation4], 4
          %s173 = int_to_ptr.vmem [resolvable:$true] %s172
          %178 = dma.hbm_to_vmem [thread:$0]  %s1, 256, %s173, [#allocation5], 128, 128, 8
        $region16: #{tpu_custom_call.1} parent=11 // pred_fallthru
          _
        // Predicated region
        $region17: #{tpu_custom_call.1} parent=11 // pred_check
          %p179 = pneg %p83
        $region18: #{tpu_custom_call.1} parent=11 // pred_check_branch
          %181 = sbr.rel (%p179) target = $region20
        $region19: #{tpu_custom_call.1} parent=11 // pred_region
          _
        $region20: #{tpu_custom_call.1} parent=11 // pred_fallthru
          _
        // Predicated region
        $region21: #{tpu_custom_call.1} parent=11 // pred_check
          %p182 = pneg %p104
        $region22: #{tpu_custom_call.1} parent=11 // pred_check_branch
          %184 = sbr.rel (%p182) target = $region24
        $region23: #{tpu_custom_call.1} parent=11 // pred_region
          _
        $region24: #{tpu_custom_call.1} parent=11 // pred_fallthru
          _
        // Predicated region
        $region25: #{tpu_custom_call.1} parent=11 // pred_check
          %p185 = pneg %p125
        $region26: #{tpu_custom_call.1} parent=11 // pred_check_branch
          %187 = sbr.rel (%p185) target = $region28
        $region27: #{tpu_custom_call.1} parent=11 // pred_region
          _
        $region28: #{tpu_custom_call.1} parent=11 // pred_fallthru
          _
      $region12: #{tpu_custom_call.1} parent=5 // pred_fallthru
        _
      %p188 = scmp.lt.s32.totalorder %s15, 2
      // Predicated region
      $region29: #{tpu_custom_call.1} parent=5 // pred_check
        %p189 = pneg %p188
      $region30: #{tpu_custom_call.1} parent=5 // pred_check_branch
        %191 = sbr.rel (%p189) target = $region32
      $region31: #{tpu_custom_call.1} parent=5 // pred_region
        // Predicated region
        $region33: #{tpu_custom_call.1} parent=31 // pred_check
          %p192 = pneg %p35
        $region34: #{tpu_custom_call.1} parent=31 // pred_check_branch
          %194 = sbr.rel (%p192) target = $region36
        $region35: #{tpu_custom_call.1} parent=31 // pred_region
          %s195 = sand.u32 %s25, 1
          %s196 = scalar_lea.sflag [#allocation3], %s195
          %s197 = sand.u32 %s25, 1
          %s198 = smul.addr %s197, 80
          %s199 = scalar_lea.vmem [#allocation2], %s198
          %s200 = smul.u32 2, %s15
          %s202 = ssub.s32 1280, 1280
          %203 = vsyncadd %s196, %s202
          %s204 = smul.addr %s200, 5
          %s205 = smul.addr %s204, 128
          %s206 = scalar_lea.hbm %s0, %s205
          %s207 = sshll.u32 %s199, 4
          %s208 = int_to_ptr.vmem [resolvable:$true] %s207
          %213 = dma.hbm_to_vmem [thread:$0]  %s206, 1280, %s208, %s196, 640, 640, 40
        $region36: #{tpu_custom_call.1} parent=31 // pred_fallthru
          _
      $region32: #{tpu_custom_call.1} parent=5 // pred_fallthru
        _
      %p214 = scmp.le.s32.totalorder 1, %s15
      %p215 = scmp.lt.s32.totalorder %s15, 3
      %p216 = pnand %p214, %p215
      %p217 = pneg %p216
      // Predicated region
      $region37: #{tpu_custom_call.1} parent=5 // pred_check
        _
      $region38: #{tpu_custom_call.1} parent=5 // pred_check_branch
        %219 = sbr.rel (%p216) target = $region40
      $region39: #{tpu_custom_call.1} parent=5 // pred_region
        %s220 = ssub.s32 %s15, 1
        %s221 = sand.u32 %s28, 1
        %s222 = scalar_lea.sflag [#allocation3], %s221
        %s223 = sand.u32 %s28, 1
        %s224 = smul.addr %s223, 80
        %s225 = scalar_lea.vmem [#allocation2], %s224
        // Predicated region
        $region41: #{tpu_custom_call.1} parent=39 // pred_check
          %p226 = pneg %p41
        $region42: #{tpu_custom_call.1} parent=39 // pred_check_branch
          %228 = sbr.rel (%p226) target = $region44
        $region43: #{tpu_custom_call.1} parent=39 // pred_region
          %229 = dma.done %s222, 1280
        $region44: #{tpu_custom_call.1} parent=39 // pred_fallthru
          _
        // Predicated region
        $region45: #{tpu_custom_call.1} parent=39 // pred_check
          %p230 = pneg %p62
        $region46: #{tpu_custom_call.1} parent=39 // pred_check_branch
          %232 = sbr.rel (%p230) target = $region48
        $region47: #{tpu_custom_call.1} parent=39 // pred_region
          %233 = dma.done [#allocation5], 256
        $region48: #{tpu_custom_call.1} parent=39 // pred_fallthru
          _
        %s234 = sand.u32 %s28, 1
        %s235 = scalar_lea.sflag [#allocation3], %s234
        %s236 = sand.u32 %s28, 1
        %s237 = smul.addr %s236, 80
        %s238 = scalar_lea.vmem [#allocation2], %s237
        %p239 = pneg %p41
        %p240 = pneg %p38
        %p241 = pneg %p62
        %p242 = pneg %p59
        %p243 = pneg %p83
        %p244 = pneg %p80
        %p245 = pneg %p104
        %p246 = pneg %p101
        %p247 = pneg %p125
        %p248 = pneg %p122
        %p249 = pneg %p151
        %p250 = pneg %p148
        %s251 = smul.u32 2, %s20
        %p252 = scmp.lt.s32.totalorder %s251, 3
        %s253 = scalar_select %p252, %s251, 3
        %s254 = smul.addr %s253, 6
        %s255 = smul.addr %s254, 8
        %s256 = scalar_lea.vmem %s5, %s255
        %s257 = smul.u32 2, %s20
        %s258 = smul.u32 2, %s20
        %p259 = scmp.lt.s32.totalorder %s258, 3
        %s260 = scalar_select %p259, %s258, 3
        %s261 = smul.addr %s260, 6
        %s262 = smul.addr %s261, 8
        %s263 = scalar_lea.vmem %s5, %s262
        %s264 = smul.u32 2, %s20
        %v265 = vld [vmem:[%s225] sm:$0xff]
        %v266 = vld [vmem:[%s225 + $0x8] sm:$0xff]
        %v267 = vld [vmem:[%s225 + $0x10] sm:$0xff]
        %v268 = vld [vmem:[%s225 + $0x18] sm:$0xff]
        %v269 = vld [vmem:[%s225 + $0x20] sm:$0xff]
        %275 = vrot.lane.b32.xlu0 %v265, 126
        %v276 = vpop.permute.xlu0 %275
        %277 = vrot.lane.b32.xlu0 %v266, 126
        %v278 = vpop.permute.xlu0 %277
        %279 = vrot.lane.b32.xlu0 %v267, 126
        %v280 = vpop.permute.xlu0 %279
        %281 = vrot.lane.b32.xlu0 %v268, 126
        %v282 = vpop.permute.xlu0 %281
        %283 = vrot.lane.b32.xlu0 %v269, 126
        %v284 = vpop.permute.xlu0 %283
        %vm285 = vcmask 1031168
        %v286 = vsel %vm285, %v276, %v278
        %v287 = vsel %vm285, %v278, %v280
        %v288 = vsel %vm285, %v280, %v282
        %v289 = vsel %vm285, %v282, %v284
        %294 = vrot.lane.b32.xlu0 %v265, 124
        %v295 = vpop.permute.xlu0 %294
        %296 = vrot.lane.b32.xlu0 %v266, 124
        %v297 = vpop.permute.xlu0 %296
        %298 = vrot.lane.b32.xlu0 %v267, 124
        %v299 = vpop.permute.xlu0 %298
        %300 = vrot.lane.b32.xlu0 %v268, 124
        %v301 = vpop.permute.xlu0 %300
        %302 = vrot.lane.b32.xlu0 %v269, 124
        %v303 = vpop.permute.xlu0 %302
        %vm304 = vcmask 1014784
        %v305 = vsel %vm304, %v295, %v297
        %v306 = vsel %vm304, %v297, %v299
        %v307 = vsel %vm304, %v299, %v301
        %v308 = vsel %vm304, %v301, %v303
        %313 = vrot.lane.b32.xlu0 %v265, 80
        %v314 = vpop.permute.xlu0 %313
        %315 = vrot.lane.b32.xlu0 %v266, 80
        %v316 = vpop.permute.xlu0 %315
        %317 = vrot.lane.b32.xlu0 %v267, 80
        %v318 = vpop.permute.xlu0 %317
        %319 = vrot.lane.b32.xlu0 %v268, 80
        %v320 = vpop.permute.xlu0 %319
        %321 = vrot.lane.b32.xlu0 %v269, 80
        %v322 = vpop.permute.xlu0 %321
        %vm323 = vcmask 654336
        %v324 = vsel %vm323, %v314, %v316
        %v325 = vsel %vm323, %v316, %v318
        %v326 = vsel %vm323, %v318, %v320
        %v327 = vsel %vm323, %v320, %v322
        %332 = vrot.lane.b32.xlu0 %v265, 78
        %v333 = vpop.permute.xlu0 %332
        %334 = vrot.lane.b32.xlu0 %v266, 78
        %v335 = vpop.permute.xlu0 %334
        %336 = vrot.lane.b32.xlu0 %v267, 78
        %v337 = vpop.permute.xlu0 %336
        %338 = vrot.lane.b32.xlu0 %v268, 78
        %v339 = vpop.permute.xlu0 %338
        %340 = vrot.lane.b32.xlu0 %v269, 78
        %v341 = vpop.permute.xlu0 %340
        %vm342 = vcmask 637952
        %v343 = vsel %vm342, %v333, %v335
        %v344 = vsel %vm342, %v335, %v337
        %v345 = vsel %vm342, %v337, %v339
        %v346 = vsel %vm342, %v339, %v341
        %351 = vrot.lane.b32.xlu0 %v265, 76
        %v352 = vpop.permute.xlu0 %351
        %353 = vrot.lane.b32.xlu0 %v266, 76
        %v354 = vpop.permute.xlu0 %353
        %355 = vrot.lane.b32.xlu0 %v267, 76
        %v356 = vpop.permute.xlu0 %355
        %357 = vrot.lane.b32.xlu0 %v268, 76
        %v358 = vpop.permute.xlu0 %357
        %359 = vrot.lane.b32.xlu0 %v269, 76
        %v360 = vpop.permute.xlu0 %359
        %vm361 = vcmask 621568
        %v362 = vsel %vm361, %v352, %v354
        %v363 = vsel %vm361, %v354, %v356
        %v364 = vsel %vm361, %v356, %v358
        %v365 = vsel %vm361, %v358, %v360
        %370 = vrot.lane.b32.xlu0 %v265, 32
        %v371 = vpop.permute.xlu0 %370
        %372 = vrot.lane.b32.xlu0 %v266, 32
        %v373 = vpop.permute.xlu0 %372
        %374 = vrot.lane.b32.xlu0 %v267, 32
        %v375 = vpop.permute.xlu0 %374
        %376 = vrot.lane.b32.xlu0 %v268, 32
        %v377 = vpop.permute.xlu0 %376
        %378 = vrot.lane.b32.xlu0 %v269, 32
        %v379 = vpop.permute.xlu0 %378
        %vm380 = vcmask 261120
        %v381 = vsel %vm380, %v371, %v373
        %v382 = vsel %vm380, %v373, %v375
        %v383 = vsel %vm380, %v375, %v377
        %v384 = vsel %vm380, %v377, %v379
        %389 = vrot.lane.b32.xlu0 %v265, 30
        %v390 = vpop.permute.xlu0 %389
        %391 = vrot.lane.b32.xlu0 %v266, 30
        %v392 = vpop.permute.xlu0 %391
        %393 = vrot.lane.b32.xlu0 %v267, 30
        %v394 = vpop.permute.xlu0 %393
        %395 = vrot.lane.b32.xlu0 %v268, 30
        %v396 = vpop.permute.xlu0 %395
        %397 = vrot.lane.b32.xlu0 %v269, 30
        %v398 = vpop.permute.xlu0 %397
        %vm399 = vcmask 244736
        %v400 = vsel %vm399, %v390, %v392
        %v401 = vsel %vm399, %v392, %v394
        %v402 = vsel %vm399, %v394, %v396
        %v403 = vsel %vm399, %v396, %v398
        %408 = vrot.lane.b32.xlu0 %v265, 28
        %v409 = vpop.permute.xlu0 %408
        %410 = vrot.lane.b32.xlu0 %v266, 28
        %v411 = vpop.permute.xlu0 %410
        %412 = vrot.lane.b32.xlu0 %v267, 28
        %v413 = vpop.permute.xlu0 %412
        %414 = vrot.lane.b32.xlu0 %v268, 28
        %v415 = vpop.permute.xlu0 %414
        %416 = vrot.lane.b32.xlu0 %v269, 28
        %v417 = vpop.permute.xlu0 %416
        %vm418 = vcmask 228352
        %v419 = vsel %vm418, %v409, %v411
        %v420 = vsel %vm418, %v411, %v413
        %v421 = vsel %vm418, %v413, %v415
        %v422 = vsel %vm418, %v415, %v417
        %s427 = scalar_lea.vmem %s225, 40 [#allocation2]
        %v428 = vld [vmem:[%s427] sm:$0xff]
        %v429 = vld [vmem:[%s427 + $0x8] sm:$0xff]
        %v430 = vld [vmem:[%s427 + $0x10] sm:$0xff]
        %v431 = vld [vmem:[%s427 + $0x18] sm:$0xff]
        %v432 = vld [vmem:[%s427 + $0x20] sm:$0xff]
        %438 = vrot.lane.b32.xlu0 %v428, 126
        %v439 = vpop.permute.xlu0 %438
        %440 = vrot.lane.b32.xlu0 %v429, 126
        %v441 = vpop.permute.xlu0 %440
        %442 = vrot.lane.b32.xlu0 %v430, 126
        %v443 = vpop.permute.xlu0 %442
        %444 = vrot.lane.b32.xlu0 %v431, 126
        %v445 = vpop.permute.xlu0 %444
        %446 = vrot.lane.b32.xlu0 %v432, 126
        %v447 = vpop.permute.xlu0 %446
        %v448 = vsel %vm285, %v439, %v441
        %v449 = vsel %vm285, %v441, %v443
        %v450 = vsel %vm285, %v443, %v445
        %v451 = vsel %vm285, %v445, %v447
        %456 = vrot.lane.b32.xlu0 %v428, 124
        %v457 = vpop.permute.xlu0 %456
        %458 = vrot.lane.b32.xlu0 %v429, 124
        %v459 = vpop.permute.xlu0 %458
        %460 = vrot.lane.b32.xlu0 %v430, 124
        %v461 = vpop.permute.xlu0 %460
        %462 = vrot.lane.b32.xlu0 %v431, 124
        %v463 = vpop.permute.xlu0 %462
        %464 = vrot.lane.b32.xlu0 %v432, 124
        %v465 = vpop.permute.xlu0 %464
        %v466 = vsel %vm304, %v457, %v459
        %v467 = vsel %vm304, %v459, %v461
        %v468 = vsel %vm304, %v461, %v463
        %v469 = vsel %vm304, %v463, %v465
        %474 = vrot.lane.b32.xlu0 %v428, 80
        %v475 = vpop.permute.xlu0 %474
        %476 = vrot.lane.b32.xlu0 %v429, 80
        %v477 = vpop.permute.xlu0 %476
        %478 = vrot.lane.b32.xlu0 %v430, 80
        %v479 = vpop.permute.xlu0 %478
        %480 = vrot.lane.b32.xlu0 %v431, 80
        %v481 = vpop.permute.xlu0 %480
        %482 = vrot.lane.b32.xlu0 %v432, 80
        %v483 = vpop.permute.xlu0 %482
        %v484 = vsel %vm323, %v475, %v477
        %v485 = vsel %vm323, %v477, %v479
        %v486 = vsel %vm323, %v479, %v481
        %v487 = vsel %vm323, %v481, %v483
        %492 = vrot.lane.b32.xlu0 %v428, 78
        %v493 = vpop.permute.xlu0 %492
        %494 = vrot.lane.b32.xlu0 %v429, 78
        %v495 = vpop.permute.xlu0 %494
        %496 = vrot.lane.b32.xlu0 %v430, 78
        %v497 = vpop.permute.xlu0 %496
        %498 = vrot.lane.b32.xlu0 %v431, 78
        %v499 = vpop.permute.xlu0 %498
        %500 = vrot.lane.b32.xlu0 %v432, 78
        %v501 = vpop.permute.xlu0 %500
        %v502 = vsel %vm342, %v493, %v495
        %v503 = vsel %vm342, %v495, %v497
        %v504 = vsel %vm342, %v497, %v499
        %v505 = vsel %vm342, %v499, %v501
        %510 = vrot.lane.b32.xlu0 %v428, 76
        %v511 = vpop.permute.xlu0 %510
        %512 = vrot.lane.b32.xlu0 %v429, 76
        %v513 = vpop.permute.xlu0 %512
        %514 = vrot.lane.b32.xlu0 %v430, 76
        %v515 = vpop.permute.xlu0 %514
        %516 = vrot.lane.b32.xlu0 %v431, 76
        %v517 = vpop.permute.xlu0 %516
        %518 = vrot.lane.b32.xlu0 %v432, 76
        %v519 = vpop.permute.xlu0 %518
        %v520 = vsel %vm361, %v511, %v513
        %v521 = vsel %vm361, %v513, %v515
        %v522 = vsel %vm361, %v515, %v517
        %v523 = vsel %vm361, %v517, %v519
        %528 = vrot.lane.b32.xlu0 %v428, 32
        %v529 = vpop.permute.xlu0 %528
        %530 = vrot.lane.b32.xlu0 %v429, 32
        %v531 = vpop.permute.xlu0 %530
        %532 = vrot.lane.b32.xlu0 %v430, 32
        %v533 = vpop.permute.xlu0 %532
        %534 = vrot.lane.b32.xlu0 %v431, 32
        %v535 = vpop.permute.xlu0 %534
        %536 = vrot.lane.b32.xlu0 %v432, 32
        %v537 = vpop.permute.xlu0 %536
        %v538 = vsel %vm380, %v529, %v531
        %v539 = vsel %vm380, %v531, %v533
        %v540 = vsel %vm380, %v533, %v535
        %v541 = vsel %vm380, %v535, %v537
        %546 = vrot.lane.b32.xlu0 %v428, 30
        %v547 = vpop.permute.xlu0 %546
        %548 = vrot.lane.b32.xlu0 %v429, 30
        %v549 = vpop.permute.xlu0 %548
        %550 = vrot.lane.b32.xlu0 %v430, 30
        %v551 = vpop.permute.xlu0 %550
        %552 = vrot.lane.b32.xlu0 %v431, 30
        %v553 = vpop.permute.xlu0 %552
        %554 = vrot.lane.b32.xlu0 %v432, 30
        %v555 = vpop.permute.xlu0 %554
        %v556 = vsel %vm399, %v547, %v549
        %v557 = vsel %vm399, %v549, %v551
        %v558 = vsel %vm399, %v551, %v553
        %v559 = vsel %vm399, %v553, %v555
        %564 = vrot.lane.b32.xlu0 %v428, 28
        %v565 = vpop.permute.xlu0 %564
        %566 = vrot.lane.b32.xlu0 %v429, 28
        %v567 = vpop.permute.xlu0 %566
        %568 = vrot.lane.b32.xlu0 %v430, 28
        %v569 = vpop.permute.xlu0 %568
        %570 = vrot.lane.b32.xlu0 %v431, 28
        %v571 = vpop.permute.xlu0 %570
        %572 = vrot.lane.b32.xlu0 %v432, 28
        %v573 = vpop.permute.xlu0 %572
        %v574 = vsel %vm418, %v565, %v567
        %v575 = vsel %vm418, %v567, %v569
        %v576 = vsel %vm418, %v569, %v571
        %v577 = vsel %vm418, %v571, %v573
        %v582 = vld [vmem:[#allocation4] sm:$0xff]
        %v583 = vld [vmem:[#allocation4 + $0x8] sm:$0xff]
        %v584 = vld [vmem:[%s2] sm:$0xff]
        %v585 = vld [vmem:[%s2 + $0x8] sm:$0xff]
        %587 = vset.pattern.permute.xlu0 0
        %588 = vperm.xlu0 %587, %v584
        %v589 = vpop.permute.xlu0 %588
        %592 = vset.pattern.permute.xlu0 0
        %593 = vperm.xlu0 %592, %v585
        %v594 = vpop.permute.xlu0 %593
        %vm596 = vcmask 588800
        %v598 = vsel %vm596, %v582, 0
        %v601 = vsel %vm596, %v583, 0
        %603 = vmatprep.subr.mxu0 0.0
        %604 = vmatpush1.msra.mxu0 0.0
        %605 = vmatprep.subr.mxu0 0.0
        %606 = vmatpush1.msra.mxu0 0.0
        %607 = vmatprep.subr.mxu0 0.0
        %608 = vmatpush1.msra.mxu0 0.0
        %609 = vmatprep.subr.mxu0 0.0
        %610 = vmatpush1.msra.mxu0 0.0
        %611 = vmatprep.subr.mxu0 0.0
        %612 = vmatpush1.msra.mxu0 0.0
        %613 = vmatprep.subr.mxu0 0.0
        %614 = vmatpush1.msra.mxu0 0.0
        %615 = vmatprep.subr.mxu0 0.0
        %616 = vmatpush1.msra.mxu0 0.0
        %617 = vmatprep.subr.mxu0 %v420
        %618 = vmatpush1.msra.mxu0 %v419
        %619 = vmatprep.subr.mxu0 %v401
        %620 = vmatpush1.msra.mxu0 %v400
        %621 = vmatprep.subr.mxu0 %v382
        %622 = vmatpush1.msra.mxu0 %v381
        %623 = vmatprep.subr.mxu0 %v363
        %624 = vmatpush1.msra.mxu0 %v362
        %625 = vmatprep.subr.mxu0 %v344
        %626 = vmatpush1.msra.mxu0 %v343
        %627 = vmatprep.subr.mxu0 %v325
        %628 = vmatpush1.msra.mxu0 %v324
        %629 = vmatprep.subr.mxu0 %v306
        %630 = vmatpush1.msra.mxu0 %v305
        %631 = vmatprep.subr.mxu0 %v287
        %632 = vmatpush1.msra.mxu0 %v286
        %633 = vmatprep.subr.mxu0 %v266
        %634 = vmatpush1.msra.mxu0 %v265
        %635 = vmatprep.subr.mxu0 0.0
        %636 = vmatpush2.msra.mxu0 0.0
        %637 = vmatprep.subr.mxu0 0.0
        %638 = vmatpush2.msra.mxu0 0.0
        %639 = vmatprep.subr.mxu0 0.0
        %640 = vmatpush2.msra.mxu0 0.0
        %641 = vmatprep.subr.mxu0 0.0
        %642 = vmatpush2.msra.mxu0 0.0
        %643 = vmatprep.subr.mxu0 0.0
        %644 = vmatpush2.msra.mxu0 0.0
        %645 = vmatprep.subr.mxu0 0.0
        %646 = vmatpush2.msra.mxu0 0.0
        %647 = vmatprep.subr.mxu0 0.0
        %648 = vmatpush2.msra.mxu0 0.0
        %649 = vmatprep.subr.mxu0 0.0
        %650 = vmatpush2.msra.mxu0 0.0
        %651 = vmatprep.subr.mxu0 0.0
        %652 = vmatpush2.msra.mxu0 0.0
        %653 = vmatprep.subr.mxu0 0.0
        %654 = vmatpush2.msra.mxu0 0.0
        %655 = vmatprep.subr.mxu0 0.0
        %656 = vmatpush2.msra.mxu0 0.0
        %657 = vmatprep.subr.mxu0 0.0
        %658 = vmatpush2.msra.mxu0 0.0
        %659 = vmatprep.subr.mxu0 0.0
        %660 = vmatpush2.msra.mxu0 0.0
        %661 = vmatprep.subr.mxu0 0.0
        %662 = vmatpush2.msra.mxu0 0.0
        %663 = vmatprep.subr.mxu0 0.0
        %664 = vmatpush2.msra.mxu0 0.0
        %665 = vmatprep.subr.mxu0 0.0
        %666 = vmatpush2.msra.mxu0 0.0
        %667 = vmatprep.mubr.f32.mxu0 0.0
        %668 = vmatmul.mubr.f32.gmra.mxu0 %v598
        %v669 = vpop.f32.mrf.mxu0
        %v670 = vadd.f32 %v589, %v669
        %v671 = vpop.f32.mrf.mxu0
        %v672 = vadd.f32 %v589, %v671
        %673 = vmatprep.mubr.f32.mxu0 0.0
        %674 = vmatmul.mubr.f32.gmra.mxu0 %v601
        %v675 = vpop.f32.mrf.mxu0
        %v676 = vadd.f32 %v594, %v675
        %v677 = vpop.f32.mrf.mxu0
        %v678 = vadd.f32 %v594, %v677
        %679 = vdwg.mxu0
        %680 = vmatprep.subr.mxu0 0.0
        %681 = vmatpush1.msra.mxu0 0.0
        %682 = vmatprep.subr.mxu0 0.0
        %683 = vmatpush1.msra.mxu0 0.0
        %684 = vmatprep.subr.mxu0 0.0
        %685 = vmatpush1.msra.mxu0 0.0
        %686 = vmatprep.subr.mxu0 0.0
        %687 = vmatpush1.msra.mxu0 0.0
        %688 = vmatprep.subr.mxu0 0.0
        %689 = vmatpush1.msra.mxu0 0.0
        %690 = vmatprep.subr.mxu0 0.0
        %691 = vmatpush1.msra.mxu0 0.0
        %692 = vmatprep.subr.mxu0 0.0
        %693 = vmatpush1.msra.mxu0 0.0
        %694 = vmatprep.subr.mxu0 %v422
        %695 = vmatpush1.msra.mxu0 %v421
        %696 = vmatprep.subr.mxu0 %v403
        %697 = vmatpush1.msra.mxu0 %v402
        %698 = vmatprep.subr.mxu0 %v384
        %699 = vmatpush1.msra.mxu0 %v383
        %700 = vmatprep.subr.mxu0 %v365
        %701 = vmatpush1.msra.mxu0 %v364
        %702 = vmatprep.subr.mxu0 %v346
        %703 = vmatpush1.msra.mxu0 %v345
        %704 = vmatprep.subr.mxu0 %v327
        %705 = vmatpush1.msra.mxu0 %v326
        %706 = vmatprep.subr.mxu0 %v308
        %707 = vmatpush1.msra.mxu0 %v307
        %708 = vmatprep.subr.mxu0 %v289
        %709 = vmatpush1.msra.mxu0 %v288
        %710 = vmatprep.subr.mxu0 %v268
        %711 = vmatpush1.msra.mxu0 %v267
        %712 = vmatprep.subr.mxu0 0.0
        %713 = vmatpush2.msra.mxu0 0.0
        %714 = vmatprep.subr.mxu0 0.0
        %715 = vmatpush2.msra.mxu0 0.0
        %716 = vmatprep.subr.mxu0 0.0
        %717 = vmatpush2.msra.mxu0 0.0
        %718 = vmatprep.subr.mxu0 0.0
        %719 = vmatpush2.msra.mxu0 0.0
        %720 = vmatprep.subr.mxu0 0.0
        %721 = vmatpush2.msra.mxu0 0.0
        %722 = vmatprep.subr.mxu0 0.0
        %723 = vmatpush2.msra.mxu0 0.0
        %724 = vmatprep.subr.mxu0 0.0
        %725 = vmatpush2.msra.mxu0 0.0
        %726 = vmatprep.subr.mxu0 0.0
        %727 = vmatpush2.msra.mxu0 0.0
        %728 = vmatprep.subr.mxu0 0.0
        %729 = vmatpush2.msra.mxu0 0.0
        %730 = vmatprep.subr.mxu0 0.0
        %731 = vmatpush2.msra.mxu0 0.0
        %732 = vmatprep.subr.mxu0 0.0
        %733 = vmatpush2.msra.mxu0 0.0
        %734 = vmatprep.subr.mxu0 0.0
        %735 = vmatpush2.msra.mxu0 0.0
        %736 = vmatprep.subr.mxu0 0.0
        %737 = vmatpush2.msra.mxu0 0.0
        %738 = vmatprep.subr.mxu0 0.0
        %739 = vmatpush2.msra.mxu0 0.0
        %740 = vmatprep.subr.mxu0 0.0
        %741 = vmatpush2.msra.mxu0 0.0
        %742 = vmatprep.subr.mxu0 0.0
        %743 = vmatpush2.msra.mxu0 0.0
        %744 = vmatprep.mubr.f32.mxu0 0.0
        %745 = vmatmul.mubr.f32.gmra.mxu0 %v598
        %v746 = vpop.f32.mrf.mxu0
        %v747 = vadd.f32 %v589, %v746
        %v748 = vpop.f32.mrf.mxu0
        %v749 = vadd.f32 %v589, %v748
        %750 = vmatprep.mubr.f32.mxu0 0.0
        %751 = vmatmul.mubr.f32.gmra.mxu0 %v601
        %v752 = vpop.f32.mrf.mxu0
        %v753 = vadd.f32 %v594, %v752
        %v754 = vpop.f32.mrf.mxu0
        %v755 = vadd.f32 %v594, %v754
        %756 = vdwg.mxu0
        %757 = vmatprep.subr.mxu0 0.0
        %758 = vmatpush1.msra.mxu0 0.0
        %759 = vmatprep.subr.mxu0 0.0
        %760 = vmatpush1.msra.mxu0 0.0
        %761 = vmatprep.subr.mxu0 0.0
        %762 = vmatpush1.msra.mxu0 0.0
        %763 = vmatprep.subr.mxu0 0.0
        %764 = vmatpush1.msra.mxu0 0.0
        %765 = vmatprep.subr.mxu0 0.0
        %766 = vmatpush1.msra.mxu0 0.0
        %767 = vmatprep.subr.mxu0 0.0
        %768 = vmatpush1.msra.mxu0 0.0
        %769 = vmatprep.subr.mxu0 0.0
        %770 = vmatpush1.msra.mxu0 0.0
        %771 = vmatprep.subr.mxu0 %v575
        %772 = vmatpush1.msra.mxu0 %v574
        %773 = vmatprep.subr.mxu0 %v557
        %774 = vmatpush1.msra.mxu0 %v556
        %775 = vmatprep.subr.mxu0 %v539
        %776 = vmatpush1.msra.mxu0 %v538
        %777 = vmatprep.subr.mxu0 %v521
        %778 = vmatpush1.msra.mxu0 %v520
        %779 = vmatprep.subr.mxu0 %v503
        %780 = vmatpush1.msra.mxu0 %v502
        %781 = vmatprep.subr.mxu0 %v485
        %782 = vmatpush1.msra.mxu0 %v484
        %783 = vmatprep.subr.mxu0 %v467
        %784 = vmatpush1.msra.mxu0 %v466
        %785 = vmatprep.subr.mxu0 %v449
        %786 = vmatpush1.msra.mxu0 %v448
        %787 = vmatprep.subr.mxu0 %v429
        %788 = vmatpush1.msra.mxu0 %v428
        %789 = vmatprep.subr.mxu0 0.0
        %790 = vmatpush2.msra.mxu0 0.0
        %791 = vmatprep.subr.mxu0 0.0
        %792 = vmatpush2.msra.mxu0 0.0
        %793 = vmatprep.subr.mxu0 0.0
        %794 = vmatpush2.msra.mxu0 0.0
        %795 = vmatprep.subr.mxu0 0.0
        %796 = vmatpush2.msra.mxu0 0.0
        %797 = vmatprep.subr.mxu0 0.0
        %798 = vmatpush2.msra.mxu0 0.0
        %799 = vmatprep.subr.mxu0 0.0
        %800 = vmatpush2.msra.mxu0 0.0
        %801 = vmatprep.subr.mxu0 0.0
        %802 = vmatpush2.msra.mxu0 0.0
        %803 = vmatprep.subr.mxu0 0.0
        %804 = vmatpush2.msra.mxu0 0.0
        %805 = vmatprep.subr.mxu0 0.0
        %806 = vmatpush2.msra.mxu0 0.0
        %807 = vmatprep.subr.mxu0 0.0
        %808 = vmatpush2.msra.mxu0 0.0
        %809 = vmatprep.subr.mxu0 0.0
        %810 = vmatpush2.msra.mxu0 0.0
        %811 = vmatprep.subr.mxu0 0.0
        %812 = vmatpush2.msra.mxu0 0.0
        %813 = vmatprep.subr.mxu0 0.0
        %814 = vmatpush2.msra.mxu0 0.0
        %815 = vmatprep.subr.mxu0 0.0
        %816 = vmatpush2.msra.mxu0 0.0
        %817 = vmatprep.subr.mxu0 0.0
        %818 = vmatpush2.msra.mxu0 0.0
        %819 = vmatprep.subr.mxu0 0.0
        %820 = vmatpush2.msra.mxu0 0.0
        %821 = vmatprep.mubr.f32.mxu0 0.0
        %822 = vmatmul.mubr.f32.gmra.mxu0 %v598
        %v823 = vpop.f32.mrf.mxu0
        %v824 = vadd.f32 %v589, %v823
        %v825 = vpop.f32.mrf.mxu0
        %v826 = vadd.f32 %v589, %v825
        %827 = vmatprep.mubr.f32.mxu0 0.0
        %828 = vmatmul.mubr.f32.gmra.mxu0 %v601
        %v829 = vpop.f32.mrf.mxu0
        %v830 = vadd.f32 %v594, %v829
        %v831 = vpop.f32.mrf.mxu0
        %v832 = vadd.f32 %v594, %v831
        %833 = vdwg.mxu0
        %834 = vmatprep.subr.mxu0 0.0
        %835 = vmatpush1.msra.mxu0 0.0
        %836 = vmatprep.subr.mxu0 0.0
        %837 = vmatpush1.msra.mxu0 0.0
        %838 = vmatprep.subr.mxu0 0.0
        %839 = vmatpush1.msra.mxu0 0.0
        %840 = vmatprep.subr.mxu0 0.0
        %841 = vmatpush1.msra.mxu0 0.0
        %842 = vmatprep.subr.mxu0 0.0
        %843 = vmatpush1.msra.mxu0 0.0
        %844 = vmatprep.subr.mxu0 0.0
        %845 = vmatpush1.msra.mxu0 0.0
        %846 = vmatprep.subr.mxu0 0.0
        %847 = vmatpush1.msra.mxu0 0.0
        %848 = vmatprep.subr.mxu0 %v577
        %849 = vmatpush1.msra.mxu0 %v576
        %850 = vmatprep.subr.mxu0 %v559
        %851 = vmatpush1.msra.mxu0 %v558
        %852 = vmatprep.subr.mxu0 %v541
        %853 = vmatpush1.msra.mxu0 %v540
        %854 = vmatprep.subr.mxu0 %v523
        %855 = vmatpush1.msra.mxu0 %v522
        %856 = vmatprep.subr.mxu0 %v505
        %857 = vmatpush1.msra.mxu0 %v504
        %858 = vmatprep.subr.mxu0 %v487
        %859 = vmatpush1.msra.mxu0 %v486
        %860 = vmatprep.subr.mxu0 %v469
        %861 = vmatpush1.msra.mxu0 %v468
        %862 = vmatprep.subr.mxu0 %v451
        %863 = vmatpush1.msra.mxu0 %v450
        %864 = vmatprep.subr.mxu0 %v431
        %865 = vmatpush1.msra.mxu0 %v430
        %866 = vmatprep.subr.mxu0 0.0
        %867 = vmatpush2.msra.mxu0 0.0
        %868 = vmatprep.subr.mxu0 0.0
        %869 = vmatpush2.msra.mxu0 0.0
        %870 = vmatprep.subr.mxu0 0.0
        %871 = vmatpush2.msra.mxu0 0.0
        %872 = vmatprep.subr.mxu0 0.0
        %873 = vmatpush2.msra.mxu0 0.0
        %874 = vmatprep.subr.mxu0 0.0
        %875 = vmatpush2.msra.mxu0 0.0
        %876 = vmatprep.subr.mxu0 0.0
        %877 = vmatpush2.msra.mxu0 0.0
        %878 = vmatprep.subr.mxu0 0.0
        %879 = vmatpush2.msra.mxu0 0.0
        %880 = vmatprep.subr.mxu0 0.0
        %881 = vmatpush2.msra.mxu0 0.0
        %882 = vmatprep.subr.mxu0 0.0
        %883 = vmatpush2.msra.mxu0 0.0
        %884 = vmatprep.subr.mxu0 0.0
        %885 = vmatpush2.msra.mxu0 0.0
        %886 = vmatprep.subr.mxu0 0.0
        %887 = vmatpush2.msra.mxu0 0.0
        %888 = vmatprep.subr.mxu0 0.0
        %889 = vmatpush2.msra.mxu0 0.0
        %890 = vmatprep.subr.mxu0 0.0
        %891 = vmatpush2.msra.mxu0 0.0
        %892 = vmatprep.subr.mxu0 0.0
        %893 = vmatpush2.msra.mxu0 0.0
        %894 = vmatprep.subr.mxu0 0.0
        %895 = vmatpush2.msra.mxu0 0.0
        %896 = vmatprep.subr.mxu0 0.0
        %897 = vmatpush2.msra.mxu0 0.0
        %898 = vmatprep.mubr.f32.mxu0 0.0
        %899 = vmatmul.mubr.f32.gmra.mxu0 %v598
        %v900 = vpop.f32.mrf.mxu0
        %v901 = vadd.f32 %v589, %v900
        %v902 = vpop.f32.mrf.mxu0
        %v903 = vadd.f32 %v589, %v902
        %904 = vmatprep.mubr.f32.mxu0 0.0
        %905 = vmatmul.mubr.f32.gmra.mxu0 %v601
        %v906 = vpop.f32.mrf.mxu0
        %v907 = vadd.f32 %v594, %v906
        %v908 = vpop.f32.mrf.mxu0
        %v909 = vadd.f32 %v594, %v908
        %910 = vdwg.mxu0
        %v911 = vmul.f32 %v670, 0.5
        %v912 = vmul.f32 %v672, 0.5
        %v913 = vmul.f32 %v747, 0.5
        %v914 = vmul.f32 %v749, 0.5
        %v915 = vmul.f32 %v824, 0.5
        %v916 = vmul.f32 %v826, 0.5
        %v917 = vmul.f32 %v901, 0.5
        %v918 = vmul.f32 %v903, 0.5
        %v919 = vmul.f32 %v676, 0.5
        %v920 = vmul.f32 %v678, 0.5
        %v921 = vmul.f32 %v753, 0.5
        %v922 = vmul.f32 %v755, 0.5
        %v923 = vmul.f32 %v830, 0.5
        %v924 = vmul.f32 %v832, 0.5
        %v925 = vmul.f32 %v907, 0.5
        %v926 = vmul.f32 %v909, 0.5
        %v927 = vmul.f32 %v670, 0.70710677
        %v928 = vmul.f32 %v672, 0.70710677
        %v929 = vmul.f32 %v747, 0.70710677
        %v930 = vmul.f32 %v749, 0.70710677
        %v931 = vmul.f32 %v824, 0.70710677
        %v932 = vmul.f32 %v826, 0.70710677
        %v933 = vmul.f32 %v901, 0.70710677
        %v934 = vmul.f32 %v903, 0.70710677
        %v935 = vmul.f32 %v676, 0.70710677
        %v936 = vmul.f32 %v678, 0.70710677
        %v937 = vmul.f32 %v753, 0.70710677
        %v938 = vmul.f32 %v755, 0.70710677
        %v939 = vmul.f32 %v830, 0.70710677
        %v940 = vmul.f32 %v832, 0.70710677
        %v941 = vmul.f32 %v907, 0.70710677
        %v942 = vmul.f32 %v909, 0.70710677
        %vm943 = vcmp.lt.f32.partialorder %v927, 0.0
        %vm944 = vcmp.lt.f32.partialorder %v928, 0.0
        %vm945 = vcmp.lt.f32.partialorder %v929, 0.0
        %vm946 = vcmp.lt.f32.partialorder %v930, 0.0
        %vm947 = vcmp.lt.f32.partialorder %v931, 0.0
        %vm948 = vcmp.lt.f32.partialorder %v932, 0.0
        %vm949 = vcmp.lt.f32.partialorder %v933, 0.0
        %vm950 = vcmp.lt.f32.partialorder %v934, 0.0
        %vm951 = vcmp.lt.f32.partialorder %v935, 0.0
        %vm952 = vcmp.lt.f32.partialorder %v936, 0.0
        %vm953 = vcmp.lt.f32.partialorder %v937, 0.0
        %vm954 = vcmp.lt.f32.partialorder %v938, 0.0
        %vm955 = vcmp.lt.f32.partialorder %v939, 0.0
        %vm956 = vcmp.lt.f32.partialorder %v940, 0.0
        %vm957 = vcmp.lt.f32.partialorder %v941, 0.0
        %vm958 = vcmp.lt.f32.partialorder %v942, 0.0
        %v959 = vsel %vm943, -1.0, 1.0
        %v960 = vsel %vm944, -1.0, 1.0
        %v961 = vsel %vm945, -1.0, 1.0
        %v962 = vsel %vm946, -1.0, 1.0
        %v963 = vsel %vm947, -1.0, 1.0
        %v964 = vsel %vm948, -1.0, 1.0
        %v965 = vsel %vm949, -1.0, 1.0
        %v966 = vsel %vm950, -1.0, 1.0
        %v967 = vsel %vm951, -1.0, 1.0
        %v968 = vsel %vm952, -1.0, 1.0
        %v969 = vsel %vm953, -1.0, 1.0
        %v970 = vsel %vm954, -1.0, 1.0
        %v971 = vsel %vm955, -1.0, 1.0
        %v972 = vsel %vm956, -1.0, 1.0
        %v973 = vsel %vm957, -1.0, 1.0
        %v974 = vsel %vm958, -1.0, 1.0
        %v975 = vand.u32 2147483647, %v927
        %v976 = vand.u32 2147483647, %v928
        %v977 = vand.u32 2147483647, %v929
        %v978 = vand.u32 2147483647, %v930
        %v979 = vand.u32 2147483647, %v931
        %v980 = vand.u32 2147483647, %v932
        %v981 = vand.u32 2147483647, %v933
        %v982 = vand.u32 2147483647, %v934
        %v983 = vand.u32 2147483647, %v935
        %v984 = vand.u32 2147483647, %v936
        %v985 = vand.u32 2147483647, %v937
        %v986 = vand.u32 2147483647, %v938
        %v987 = vand.u32 2147483647, %v939
        %v988 = vand.u32 2147483647, %v940
        %v989 = vand.u32 2147483647, %v941
        %v990 = vand.u32 2147483647, %v942
        %v991 = vmul.f32 %v975, 0.3275911
        %v992 = vmul.f32 %v976, 0.3275911
        %v993 = vmul.f32 %v977, 0.3275911
        %v994 = vmul.f32 %v978, 0.3275911
        %v995 = vmul.f32 %v979, 0.3275911
        %v996 = vmul.f32 %v980, 0.3275911
        %v997 = vmul.f32 %v981, 0.3275911
        %v998 = vmul.f32 %v982, 0.3275911
        %v999 = vmul.f32 %v983, 0.3275911
        %v1000 = vmul.f32 %v984, 0.3275911
        %v1001 = vmul.f32 %v985, 0.3275911
        %v1002 = vmul.f32 %v986, 0.3275911
        %v1003 = vmul.f32 %v987, 0.3275911
        %v1004 = vmul.f32 %v988, 0.3275911
        %v1005 = vmul.f32 %v989, 0.3275911
        %v1006 = vmul.f32 %v990, 0.3275911
        %v1007 = vadd.f32 %v991, 1.0
        %v1008 = vadd.f32 %v992, 1.0
        %v1009 = vadd.f32 %v993, 1.0
        %v1010 = vadd.f32 %v994, 1.0
        %v1011 = vadd.f32 %v995, 1.0
        %v1012 = vadd.f32 %v996, 1.0
        %v1013 = vadd.f32 %v997, 1.0
        %v1014 = vadd.f32 %v998, 1.0
        %v1015 = vadd.f32 %v999, 1.0
        %v1016 = vadd.f32 %v1000, 1.0
        %v1017 = vadd.f32 %v1001, 1.0
        %v1018 = vadd.f32 %v1002, 1.0
        %v1019 = vadd.f32 %v1003, 1.0
        %v1020 = vadd.f32 %v1004, 1.0
        %v1021 = vadd.f32 %v1005, 1.0
        %v1022 = vadd.f32 %v1006, 1.0
        %v1023 = vrcp.pop %v1007
        %v1024 = vrcp.pop %v1008
        %v1025 = vrcp.pop %v1009
        %v1026 = vrcp.pop %v1010
        %v1027 = vrcp.pop %v1011
        %v1028 = vrcp.pop %v1012
        %v1029 = vrcp.pop %v1013
        %v1030 = vrcp.pop %v1014
        %v1031 = vrcp.pop %v1015
        %v1032 = vrcp.pop %v1016
        %v1033 = vrcp.pop %v1017
        %v1034 = vrcp.pop %v1018
        %v1035 = vrcp.pop %v1019
        %v1036 = vrcp.pop %v1020
        %v1037 = vrcp.pop %v1021
        %v1038 = vrcp.pop %v1022
        %v1039 = vmul.f32 %v1023, 1.0614054
        %v1040 = vmul.f32 %v1024, 1.0614054
        %v1041 = vmul.f32 %v1025, 1.0614054
        %v1042 = vmul.f32 %v1026, 1.0614054
        %v1043 = vmul.f32 %v1027, 1.0614054
        %v1044 = vmul.f32 %v1028, 1.0614054
        %v1045 = vmul.f32 %v1029, 1.0614054
        %v1046 = vmul.f32 %v1030, 1.0614054
        %v1047 = vmul.f32 %v1031, 1.0614054
        %v1048 = vmul.f32 %v1032, 1.0614054
        %v1049 = vmul.f32 %v1033, 1.0614054
        %v1050 = vmul.f32 %v1034, 1.0614054
        %v1051 = vmul.f32 %v1035, 1.0614054
        %v1052 = vmul.f32 %v1036, 1.0614054
        %v1053 = vmul.f32 %v1037, 1.0614054
        %v1054 = vmul.f32 %v1038, 1.0614054
        %v1055 = vadd.f32 %v1039, -1.4531521
        %v1056 = vadd.f32 %v1040, -1.4531521
        %v1057 = vadd.f32 %v1041, -1.4531521
        %v1058 = vadd.f32 %v1042, -1.4531521
        %v1059 = vadd.f32 %v1043, -1.4531521
        %v1060 = vadd.f32 %v1044, -1.4531521
        %v1061 = vadd.f32 %v1045, -1.4531521
        %v1062 = vadd.f32 %v1046, -1.4531521
        %v1063 = vadd.f32 %v1047, -1.4531521
        %v1064 = vadd.f32 %v1048, -1.4531521
        %v1065 = vadd.f32 %v1049, -1.4531521
        %v1066 = vadd.f32 %v1050, -1.4531521
        %v1067 = vadd.f32 %v1051, -1.4531521
        %v1068 = vadd.f32 %v1052, -1.4531521
        %v1069 = vadd.f32 %v1053, -1.4531521
        %v1070 = vadd.f32 %v1054, -1.4531521
        %v1071 = vmul.f32 %v1055, %v1023
        %v1072 = vmul.f32 %v1056, %v1024
        %v1073 = vmul.f32 %v1057, %v1025
        %v1074 = vmul.f32 %v1058, %v1026
        %v1075 = vmul.f32 %v1059, %v1027
        %v1076 = vmul.f32 %v1060, %v1028
        %v1077 = vmul.f32 %v1061, %v1029
        %v1078 = vmul.f32 %v1062, %v1030
        %v1079 = vmul.f32 %v1063, %v1031
        %v1080 = vmul.f32 %v1064, %v1032
        %v1081 = vmul.f32 %v1065, %v1033
        %v1082 = vmul.f32 %v1066, %v1034
        %v1083 = vmul.f32 %v1067, %v1035
        %v1084 = vmul.f32 %v1068, %v1036
        %v1085 = vmul.f32 %v1069, %v1037
        %v1086 = vmul.f32 %v1070, %v1038
        %v1087 = vadd.f32 %v1071, 1.4214138
        %v1088 = vadd.f32 %v1072, 1.4214138
        %v1089 = vadd.f32 %v1073, 1.4214138
        %v1090 = vadd.f32 %v1074, 1.4214138
        %v1091 = vadd.f32 %v1075, 1.4214138
        %v1092 = vadd.f32 %v1076, 1.4214138
        %v1093 = vadd.f32 %v1077, 1.4214138
        %v1094 = vadd.f32 %v1078, 1.4214138
        %v1095 = vadd.f32 %v1079, 1.4214138
        %v1096 = vadd.f32 %v1080, 1.4214138
        %v1097 = vadd.f32 %v1081, 1.4214138
        %v1098 = vadd.f32 %v1082, 1.4214138
        %v1099 = vadd.f32 %v1083, 1.4214138
        %v1100 = vadd.f32 %v1084, 1.4214138
        %v1101 = vadd.f32 %v1085, 1.4214138
        %v1102 = vadd.f32 %v1086, 1.4214138
        %v1103 = vmul.f32 %v1087, %v1023
        %v1104 = vmul.f32 %v1088, %v1024
        %v1105 = vmul.f32 %v1089, %v1025
        %v1106 = vmul.f32 %v1090, %v1026
        %v1107 = vmul.f32 %v1091, %v1027
        %v1108 = vmul.f32 %v1092, %v1028
        %v1109 = vmul.f32 %v1093, %v1029
        %v1110 = vmul.f32 %v1094, %v1030
        %v1111 = vmul.f32 %v1095, %v1031
        %v1112 = vmul.f32 %v1096, %v1032
        %v1113 = vmul.f32 %v1097, %v1033
        %v1114 = vmul.f32 %v1098, %v1034
        %v1115 = vmul.f32 %v1099, %v1035
        %v1116 = vmul.f32 %v1100, %v1036
        %v1117 = vmul.f32 %v1101, %v1037
        %v1118 = vmul.f32 %v1102, %v1038
        %v1119 = vadd.f32 %v1103, -0.28449672
        %v1120 = vadd.f32 %v1104, -0.28449672
        %v1121 = vadd.f32 %v1105, -0.28449672
        %v1122 = vadd.f32 %v1106, -0.28449672
        %v1123 = vadd.f32 %v1107, -0.28449672
        %v1124 = vadd.f32 %v1108, -0.28449672
        %v1125 = vadd.f32 %v1109, -0.28449672
        %v1126 = vadd.f32 %v1110, -0.28449672
        %v1127 = vadd.f32 %v1111, -0.28449672
        %v1128 = vadd.f32 %v1112, -0.28449672
        %v1129 = vadd.f32 %v1113, -0.28449672
        %v1130 = vadd.f32 %v1114, -0.28449672
        %v1131 = vadd.f32 %v1115, -0.28449672
        %v1132 = vadd.f32 %v1116, -0.28449672
        %v1133 = vadd.f32 %v1117, -0.28449672
        %v1134 = vadd.f32 %v1118, -0.28449672
        %v1135 = vmul.f32 %v1119, %v1023
        %v1136 = vmul.f32 %v1120, %v1024
        %v1137 = vmul.f32 %v1121, %v1025
        %v1138 = vmul.f32 %v1122, %v1026
        %v1139 = vmul.f32 %v1123, %v1027
        %v1140 = vmul.f32 %v1124, %v1028
        %v1141 = vmul.f32 %v1125, %v1029
        %v1142 = vmul.f32 %v1126, %v1030
        %v1143 = vmul.f32 %v1127, %v1031
        %v1144 = vmul.f32 %v1128, %v1032
        %v1145 = vmul.f32 %v1129, %v1033
        %v1146 = vmul.f32 %v1130, %v1034
        %v1147 = vmul.f32 %v1131, %v1035
        %v1148 = vmul.f32 %v1132, %v1036
        %v1149 = vmul.f32 %v1133, %v1037
        %v1150 = vmul.f32 %v1134, %v1038
        %v1151 = vadd.f32 %v1135, 0.2548296
        %v1152 = vadd.f32 %v1136, 0.2548296
        %v1153 = vadd.f32 %v1137, 0.2548296
        %v1154 = vadd.f32 %v1138, 0.2548296
        %v1155 = vadd.f32 %v1139, 0.2548296
        %v1156 = vadd.f32 %v1140, 0.2548296
        %v1157 = vadd.f32 %v1141, 0.2548296
        %v1158 = vadd.f32 %v1142, 0.2548296
        %v1159 = vadd.f32 %v1143, 0.2548296
        %v1160 = vadd.f32 %v1144, 0.2548296
        %v1161 = vadd.f32 %v1145, 0.2548296
        %v1162 = vadd.f32 %v1146, 0.2548296
        %v1163 = vadd.f32 %v1147, 0.2548296
        %v1164 = vadd.f32 %v1148, 0.2548296
        %v1165 = vadd.f32 %v1149, 0.2548296
        %v1166 = vadd.f32 %v1150, 0.2548296
        %v1167 = vmul.f32 %v1151, %v1023
        %v1168 = vmul.f32 %v1152, %v1024
        %v1169 = vmul.f32 %v1153, %v1025
        %v1170 = vmul.f32 %v1154, %v1026
        %v1171 = vmul.f32 %v1155, %v1027
        %v1172 = vmul.f32 %v1156, %v1028
        %v1173 = vmul.f32 %v1157, %v1029
        %v1174 = vmul.f32 %v1158, %v1030
        %v1175 = vmul.f32 %v1159, %v1031
        %v1176 = vmul.f32 %v1160, %v1032
        %v1177 = vmul.f32 %v1161, %v1033
        %v1178 = vmul.f32 %v1162, %v1034
        %v1179 = vmul.f32 %v1163, %v1035
        %v1180 = vmul.f32 %v1164, %v1036
        %v1181 = vmul.f32 %v1165, %v1037
        %v1182 = vmul.f32 %v1166, %v1038
        %v1183 = vsub.f32 0.0, %v975
        %v1184 = vsub.f32 0.0, %v976
        %v1185 = vsub.f32 0.0, %v977
        %v1186 = vsub.f32 0.0, %v978
        %v1187 = vsub.f32 0.0, %v979
        %v1188 = vsub.f32 0.0, %v980
        %v1189 = vsub.f32 0.0, %v981
        %v1190 = vsub.f32 0.0, %v982
        %v1191 = vsub.f32 0.0, %v983
        %v1192 = vsub.f32 0.0, %v984
        %v1193 = vsub.f32 0.0, %v985
        %v1194 = vsub.f32 0.0, %v986
        %v1195 = vsub.f32 0.0, %v987
        %v1196 = vsub.f32 0.0, %v988
        %v1197 = vsub.f32 0.0, %v989
        %v1198 = vsub.f32 0.0, %v990
        %v1199 = vmul.f32 %v1183, %v975
        %v1200 = vmul.f32 %v1184, %v976
        %v1201 = vmul.f32 %v1185, %v977
        %v1202 = vmul.f32 %v1186, %v978
        %v1203 = vmul.f32 %v1187, %v979
        %v1204 = vmul.f32 %v1188, %v980
        %v1205 = vmul.f32 %v1189, %v981
        %v1206 = vmul.f32 %v1190, %v982
        %v1207 = vmul.f32 %v1191, %v983
        %v1208 = vmul.f32 %v1192, %v984
        %v1209 = vmul.f32 %v1193, %v985
        %v1210 = vmul.f32 %v1194, %v986
        %v1211 = vmul.f32 %v1195, %v987
        %v1212 = vmul.f32 %v1196, %v988
        %v1213 = vmul.f32 %v1197, %v989
        %v1214 = vmul.f32 %v1198, %v990
        %v1215 = vmul.f32 %v1199, 1.442695
        %v1216 = vpow.pop %v1215
        %v1217 = vmul.f32 %v1200, 1.442695
        %v1218 = vpow.pop %v1217
        %v1219 = vmul.f32 %v1201, 1.442695
        %v1220 = vpow.pop %v1219
        %v1221 = vmul.f32 %v1202, 1.442695
        %v1222 = vpow.pop %v1221
        %v1223 = vmul.f32 %v1203, 1.442695
        %v1224 = vpow.pop %v1223
        %v1225 = vmul.f32 %v1204, 1.442695
        %v1226 = vpow.pop %v1225
        %v1227 = vmul.f32 %v1205, 1.442695
        %v1228 = vpow.pop %v1227
        %v1229 = vmul.f32 %v1206, 1.442695
        %v1230 = vpow.pop %v1229
        %v1231 = vmul.f32 %v1207, 1.442695
        %v1232 = vpow.pop %v1231
        %v1233 = vmul.f32 %v1208, 1.442695
        %v1234 = vpow.pop %v1233
        %v1235 = vmul.f32 %v1209, 1.442695
        %v1236 = vpow.pop %v1235
        %v1237 = vmul.f32 %v1210, 1.442695
        %v1238 = vpow.pop %v1237
        %v1239 = vmul.f32 %v1211, 1.442695
        %v1240 = vpow.pop %v1239
        %v1241 = vmul.f32 %v1212, 1.442695
        %v1242 = vpow.pop %v1241
        %v1243 = vmul.f32 %v1213, 1.442695
        %v1244 = vpow.pop %v1243
        %v1245 = vmul.f32 %v1214, 1.442695
        %v1246 = vpow.pop %v1245
        %v1247 = vmul.f32 %v1167, %v1216
        %v1248 = vmul.f32 %v1168, %v1218
        %v1249 = vmul.f32 %v1169, %v1220
        %v1250 = vmul.f32 %v1170, %v1222
        %v1251 = vmul.f32 %v1171, %v1224
        %v1252 = vmul.f32 %v1172, %v1226
        %v1253 = vmul.f32 %v1173, %v1228
        %v1254 = vmul.f32 %v1174, %v1230
        %v1255 = vmul.f32 %v1175, %v1232
        %v1256 = vmul.f32 %v1176, %v1234
        %v1257 = vmul.f32 %v1177, %v1236
        %v1258 = vmul.f32 %v1178, %v1238
        %v1259 = vmul.f32 %v1179, %v1240
        %v1260 = vmul.f32 %v1180, %v1242
        %v1261 = vmul.f32 %v1181, %v1244
        %v1262 = vmul.f32 %v1182, %v1246
        %v1263 = vsub.f32 1.0, %v1247
        %v1264 = vsub.f32 1.0, %v1248
        %v1265 = vsub.f32 1.0, %v1249
        %v1266 = vsub.f32 1.0, %v1250
        %v1267 = vsub.f32 1.0, %v1251
        %v1268 = vsub.f32 1.0, %v1252
        %v1269 = vsub.f32 1.0, %v1253
        %v1270 = vsub.f32 1.0, %v1254
        %v1271 = vsub.f32 1.0, %v1255
        %v1272 = vsub.f32 1.0, %v1256
        %v1273 = vsub.f32 1.0, %v1257
        %v1274 = vsub.f32 1.0, %v1258
        %v1275 = vsub.f32 1.0, %v1259
        %v1276 = vsub.f32 1.0, %v1260
        %v1277 = vsub.f32 1.0, %v1261
        %v1278 = vsub.f32 1.0, %v1262
        %v1279 = vmul.f32 %v959, %v1263
        %v1280 = vmul.f32 %v960, %v1264
        %v1281 = vmul.f32 %v961, %v1265
        %v1282 = vmul.f32 %v962, %v1266
        %v1283 = vmul.f32 %v963, %v1267
        %v1284 = vmul.f32 %v964, %v1268
        %v1285 = vmul.f32 %v965, %v1269
        %v1286 = vmul.f32 %v966, %v1270
        %v1287 = vmul.f32 %v967, %v1271
        %v1288 = vmul.f32 %v968, %v1272
        %v1289 = vmul.f32 %v969, %v1273
        %v1290 = vmul.f32 %v970, %v1274
        %v1291 = vmul.f32 %v971, %v1275
        %v1292 = vmul.f32 %v972, %v1276
        %v1293 = vmul.f32 %v973, %v1277
        %v1294 = vmul.f32 %v974, %v1278
        %v1295 = vadd.f32 %v1279, 1.0
        %v1296 = vadd.f32 %v1280, 1.0
        %v1297 = vadd.f32 %v1281, 1.0
        %v1298 = vadd.f32 %v1282, 1.0
        %v1299 = vadd.f32 %v1283, 1.0
        %v1300 = vadd.f32 %v1284, 1.0
        %v1301 = vadd.f32 %v1285, 1.0
        %v1302 = vadd.f32 %v1286, 1.0
        %v1303 = vadd.f32 %v1287, 1.0
        %v1304 = vadd.f32 %v1288, 1.0
        %v1305 = vadd.f32 %v1289, 1.0
        %v1306 = vadd.f32 %v1290, 1.0
        %v1307 = vadd.f32 %v1291, 1.0
        %v1308 = vadd.f32 %v1292, 1.0
        %v1309 = vadd.f32 %v1293, 1.0
        %v1310 = vadd.f32 %v1294, 1.0
        %v1311 = vmul.f32 %v911, %v1295
        %v1312 = vmul.f32 %v912, %v1296
        %v1313 = vmul.f32 %v913, %v1297
        %v1314 = vmul.f32 %v914, %v1298
        %v1315 = vmul.f32 %v915, %v1299
        %v1316 = vmul.f32 %v916, %v1300
        %v1317 = vmul.f32 %v917, %v1301
        %v1318 = vmul.f32 %v918, %v1302
        %v1319 = vmul.f32 %v919, %v1303
        %v1320 = vmul.f32 %v920, %v1304
        %v1321 = vmul.f32 %v921, %v1305
        %v1322 = vmul.f32 %v922, %v1306
        %v1323 = vmul.f32 %v923, %v1307
        %v1324 = vmul.f32 %v924, %v1308
        %v1325 = vmul.f32 %v925, %v1309
        %v1326 = vmul.f32 %v926, %v1310
        %1335 = vrot.lane.b32.xlu0 %v1311, 126
        %v1336 = vpop.permute.xlu0 %1335
        %1337 = vrot.lane.b32.xlu0 %v1312, 126
        %v1338 = vpop.permute.xlu0 %1337
        %1339 = vrot.lane.b32.xlu0 %v1313, 126
        %v1340 = vpop.permute.xlu0 %1339
        %1341 = vrot.lane.b32.xlu0 %v1314, 126
        %v1342 = vpop.permute.xlu0 %1341
        %1343 = vrot.lane.b32.xlu0 %v1319, 126
        %v1344 = vpop.permute.xlu0 %1343
        %1345 = vrot.lane.b32.xlu0 %v1320, 126
        %v1346 = vpop.permute.xlu0 %1345
        %1347 = vrot.lane.b32.xlu0 %v1321, 126
        %v1348 = vpop.permute.xlu0 %1347
        %1349 = vrot.lane.b32.xlu0 %v1322, 126
        %v1350 = vpop.permute.xlu0 %1349
        %v1351 = vsel %vm285, %v1336, %v1338
        %v1352 = vsel %vm285, %v1338, %v1340
        %v1353 = vsel %vm285, %v1340, %v1342
        %v1354 = vsel %vm285, %v1344, %v1346
        %v1355 = vsel %vm285, %v1346, %v1348
        %v1356 = vsel %vm285, %v1348, %v1350
        %1363 = vrot.lane.b32.xlu0 %v1311, 124
        %v1364 = vpop.permute.xlu0 %1363
        %1365 = vrot.lane.b32.xlu0 %v1312, 124
        %v1366 = vpop.permute.xlu0 %1365
        %1367 = vrot.lane.b32.xlu0 %v1313, 124
        %v1368 = vpop.permute.xlu0 %1367
        %1369 = vrot.lane.b32.xlu0 %v1314, 124
        %v1370 = vpop.permute.xlu0 %1369
        %1371 = vrot.lane.b32.xlu0 %v1319, 124
        %v1372 = vpop.permute.xlu0 %1371
        %1373 = vrot.lane.b32.xlu0 %v1320, 124
        %v1374 = vpop.permute.xlu0 %1373
        %1375 = vrot.lane.b32.xlu0 %v1321, 124
        %v1376 = vpop.permute.xlu0 %1375
        %1377 = vrot.lane.b32.xlu0 %v1322, 124
        %v1378 = vpop.permute.xlu0 %1377
        %v1379 = vsel %vm304, %v1364, %v1366
        %v1380 = vsel %vm304, %v1366, %v1368
        %v1381 = vsel %vm304, %v1368, %v1370
        %v1382 = vsel %vm304, %v1372, %v1374
        %v1383 = vsel %vm304, %v1374, %v1376
        %v1384 = vsel %vm304, %v1376, %v1378
        %1391 = vrot.lane.b32.xlu0 %v1311, 80
        %v1392 = vpop.permute.xlu0 %1391
        %1393 = vrot.lane.b32.xlu0 %v1312, 80
        %v1394 = vpop.permute.xlu0 %1393
        %1395 = vrot.lane.b32.xlu0 %v1313, 80
        %v1396 = vpop.permute.xlu0 %1395
        %1397 = vrot.lane.b32.xlu0 %v1314, 80
        %v1398 = vpop.permute.xlu0 %1397
        %1399 = vrot.lane.b32.xlu0 %v1319, 80
        %v1400 = vpop.permute.xlu0 %1399
        %1401 = vrot.lane.b32.xlu0 %v1320, 80
        %v1402 = vpop.permute.xlu0 %1401
        %1403 = vrot.lane.b32.xlu0 %v1321, 80
        %v1404 = vpop.permute.xlu0 %1403
        %1405 = vrot.lane.b32.xlu0 %v1322, 80
        %v1406 = vpop.permute.xlu0 %1405
        %v1407 = vsel %vm323, %v1392, %v1394
        %v1408 = vsel %vm323, %v1394, %v1396
        %v1409 = vsel %vm323, %v1396, %v1398
        %v1410 = vsel %vm323, %v1400, %v1402
        %v1411 = vsel %vm323, %v1402, %v1404
        %v1412 = vsel %vm323, %v1404, %v1406
        %1419 = vrot.lane.b32.xlu0 %v1311, 78
        %v1420 = vpop.permute.xlu0 %1419
        %1421 = vrot.lane.b32.xlu0 %v1312, 78
        %v1422 = vpop.permute.xlu0 %1421
        %1423 = vrot.lane.b32.xlu0 %v1313, 78
        %v1424 = vpop.permute.xlu0 %1423
        %1425 = vrot.lane.b32.xlu0 %v1314, 78
        %v1426 = vpop.permute.xlu0 %1425
        %1427 = vrot.lane.b32.xlu0 %v1319, 78
        %v1428 = vpop.permute.xlu0 %1427
        %1429 = vrot.lane.b32.xlu0 %v1320, 78
        %v1430 = vpop.permute.xlu0 %1429
        %1431 = vrot.lane.b32.xlu0 %v1321, 78
        %v1432 = vpop.permute.xlu0 %1431
        %1433 = vrot.lane.b32.xlu0 %v1322, 78
        %v1434 = vpop.permute.xlu0 %1433
        %v1435 = vsel %vm342, %v1420, %v1422
        %v1436 = vsel %vm342, %v1422, %v1424
        %v1437 = vsel %vm342, %v1424, %v1426
        %v1438 = vsel %vm342, %v1428, %v1430
        %v1439 = vsel %vm342, %v1430, %v1432
        %v1440 = vsel %vm342, %v1432, %v1434
        %1447 = vrot.lane.b32.xlu0 %v1311, 76
        %v1448 = vpop.permute.xlu0 %1447
        %1449 = vrot.lane.b32.xlu0 %v1312, 76
        %v1450 = vpop.permute.xlu0 %1449
        %1451 = vrot.lane.b32.xlu0 %v1313, 76
        %v1452 = vpop.permute.xlu0 %1451
        %1453 = vrot.lane.b32.xlu0 %v1314, 76
        %v1454 = vpop.permute.xlu0 %1453
        %1455 = vrot.lane.b32.xlu0 %v1319, 76
        %v1456 = vpop.permute.xlu0 %1455
        %1457 = vrot.lane.b32.xlu0 %v1320, 76
        %v1458 = vpop.permute.xlu0 %1457
        %1459 = vrot.lane.b32.xlu0 %v1321, 76
        %v1460 = vpop.permute.xlu0 %1459
        %1461 = vrot.lane.b32.xlu0 %v1322, 76
        %v1462 = vpop.permute.xlu0 %1461
        %v1463 = vsel %vm361, %v1448, %v1450
        %v1464 = vsel %vm361, %v1450, %v1452
        %v1465 = vsel %vm361, %v1452, %v1454
        %v1466 = vsel %vm361, %v1456, %v1458
        %v1467 = vsel %vm361, %v1458, %v1460
        %v1468 = vsel %vm361, %v1460, %v1462
        %1475 = vrot.lane.b32.xlu0 %v1311, 32
        %v1476 = vpop.permute.xlu0 %1475
        %1477 = vrot.lane.b32.xlu0 %v1312, 32
        %v1478 = vpop.permute.xlu0 %1477
        %1479 = vrot.lane.b32.xlu0 %v1313, 32
        %v1480 = vpop.permute.xlu0 %1479
        %1481 = vrot.lane.b32.xlu0 %v1314, 32
        %v1482 = vpop.permute.xlu0 %1481
        %1483 = vrot.lane.b32.xlu0 %v1319, 32
        %v1484 = vpop.permute.xlu0 %1483
        %1485 = vrot.lane.b32.xlu0 %v1320, 32
        %v1486 = vpop.permute.xlu0 %1485
        %1487 = vrot.lane.b32.xlu0 %v1321, 32
        %v1488 = vpop.permute.xlu0 %1487
        %1489 = vrot.lane.b32.xlu0 %v1322, 32
        %v1490 = vpop.permute.xlu0 %1489
        %v1491 = vsel %vm380, %v1476, %v1478
        %v1492 = vsel %vm380, %v1478, %v1480
        %v1493 = vsel %vm380, %v1480, %v1482
        %v1494 = vsel %vm380, %v1484, %v1486
        %v1495 = vsel %vm380, %v1486, %v1488
        %v1496 = vsel %vm380, %v1488, %v1490
        %1503 = vrot.lane.b32.xlu0 %v1311, 30
        %v1504 = vpop.permute.xlu0 %1503
        %1505 = vrot.lane.b32.xlu0 %v1312, 30
        %v1506 = vpop.permute.xlu0 %1505
        %1507 = vrot.lane.b32.xlu0 %v1313, 30
        %v1508 = vpop.permute.xlu0 %1507
        %1509 = vrot.lane.b32.xlu0 %v1314, 30
        %v1510 = vpop.permute.xlu0 %1509
        %1511 = vrot.lane.b32.xlu0 %v1319, 30
        %v1512 = vpop.permute.xlu0 %1511
        %1513 = vrot.lane.b32.xlu0 %v1320, 30
        %v1514 = vpop.permute.xlu0 %1513
        %1515 = vrot.lane.b32.xlu0 %v1321, 30
        %v1516 = vpop.permute.xlu0 %1515
        %1517 = vrot.lane.b32.xlu0 %v1322, 30
        %v1518 = vpop.permute.xlu0 %1517
        %v1519 = vsel %vm399, %v1504, %v1506
        %v1520 = vsel %vm399, %v1506, %v1508
        %v1521 = vsel %vm399, %v1508, %v1510
        %v1522 = vsel %vm399, %v1512, %v1514
        %v1523 = vsel %vm399, %v1514, %v1516
        %v1524 = vsel %vm399, %v1516, %v1518
        %1531 = vrot.lane.b32.xlu0 %v1311, 28
        %v1532 = vpop.permute.xlu0 %1531
        %1533 = vrot.lane.b32.xlu0 %v1312, 28
        %v1534 = vpop.permute.xlu0 %1533
        %1535 = vrot.lane.b32.xlu0 %v1313, 28
        %v1536 = vpop.permute.xlu0 %1535
        %1537 = vrot.lane.b32.xlu0 %v1314, 28
        %v1538 = vpop.permute.xlu0 %1537
        %1539 = vrot.lane.b32.xlu0 %v1319, 28
        %v1540 = vpop.permute.xlu0 %1539
        %1541 = vrot.lane.b32.xlu0 %v1320, 28
        %v1542 = vpop.permute.xlu0 %1541
        %1543 = vrot.lane.b32.xlu0 %v1321, 28
        %v1544 = vpop.permute.xlu0 %1543
        %1545 = vrot.lane.b32.xlu0 %v1322, 28
        %v1546 = vpop.permute.xlu0 %1545
        %v1547 = vsel %vm418, %v1532, %v1534
        %v1548 = vsel %vm418, %v1534, %v1536
        %v1549 = vsel %vm418, %v1536, %v1538
        %v1550 = vsel %vm418, %v1540, %v1542
        %v1551 = vsel %vm418, %v1542, %v1544
        %v1552 = vsel %vm418, %v1544, %v1546
        %1567 = vrot.lane.b32.xlu0 %v1315, 126
        %v1568 = vpop.permute.xlu0 %1567
        %1569 = vrot.lane.b32.xlu0 %v1316, 126
        %v1570 = vpop.permute.xlu0 %1569
        %1571 = vrot.lane.b32.xlu0 %v1317, 126
        %v1572 = vpop.permute.xlu0 %1571
        %1573 = vrot.lane.b32.xlu0 %v1318, 126
        %v1574 = vpop.permute.xlu0 %1573
        %1575 = vrot.lane.b32.xlu0 %v1323, 126
        %v1576 = vpop.permute.xlu0 %1575
        %1577 = vrot.lane.b32.xlu0 %v1324, 126
        %v1578 = vpop.permute.xlu0 %1577
        %1579 = vrot.lane.b32.xlu0 %v1325, 126
        %v1580 = vpop.permute.xlu0 %1579
        %1581 = vrot.lane.b32.xlu0 %v1326, 126
        %v1582 = vpop.permute.xlu0 %1581
        %v1583 = vsel %vm285, %v1568, %v1570
        %v1584 = vsel %vm285, %v1570, %v1572
        %v1585 = vsel %vm285, %v1572, %v1574
        %v1586 = vsel %vm285, %v1576, %v1578
        %v1587 = vsel %vm285, %v1578, %v1580
        %v1588 = vsel %vm285, %v1580, %v1582
        %1595 = vrot.lane.b32.xlu0 %v1315, 124
        %v1596 = vpop.permute.xlu0 %1595
        %1597 = vrot.lane.b32.xlu0 %v1316, 124
        %v1598 = vpop.permute.xlu0 %1597
        %1599 = vrot.lane.b32.xlu0 %v1317, 124
        %v1600 = vpop.permute.xlu0 %1599
        %1601 = vrot.lane.b32.xlu0 %v1318, 124
        %v1602 = vpop.permute.xlu0 %1601
        %1603 = vrot.lane.b32.xlu0 %v1323, 124
        %v1604 = vpop.permute.xlu0 %1603
        %1605 = vrot.lane.b32.xlu0 %v1324, 124
        %v1606 = vpop.permute.xlu0 %1605
        %1607 = vrot.lane.b32.xlu0 %v1325, 124
        %v1608 = vpop.permute.xlu0 %1607
        %1609 = vrot.lane.b32.xlu0 %v1326, 124
        %v1610 = vpop.permute.xlu0 %1609
        %v1611 = vsel %vm304, %v1596, %v1598
        %v1612 = vsel %vm304, %v1598, %v1600
        %v1613 = vsel %vm304, %v1600, %v1602
        %v1614 = vsel %vm304, %v1604, %v1606
        %v1615 = vsel %vm304, %v1606, %v1608
        %v1616 = vsel %vm304, %v1608, %v1610
        %1623 = vrot.lane.b32.xlu0 %v1315, 80
        %v1624 = vpop.permute.xlu0 %1623
        %1625 = vrot.lane.b32.xlu0 %v1316, 80
        %v1626 = vpop.permute.xlu0 %1625
        %1627 = vrot.lane.b32.xlu0 %v1317, 80
        %v1628 = vpop.permute.xlu0 %1627
        %1629 = vrot.lane.b32.xlu0 %v1318, 80
        %v1630 = vpop.permute.xlu0 %1629
        %1631 = vrot.lane.b32.xlu0 %v1323, 80
        %v1632 = vpop.permute.xlu0 %1631
        %1633 = vrot.lane.b32.xlu0 %v1324, 80
        %v1634 = vpop.permute.xlu0 %1633
        %1635 = vrot.lane.b32.xlu0 %v1325, 80
        %v1636 = vpop.permute.xlu0 %1635
        %1637 = vrot.lane.b32.xlu0 %v1326, 80
        %v1638 = vpop.permute.xlu0 %1637
        %v1639 = vsel %vm323, %v1624, %v1626
        %v1640 = vsel %vm323, %v1626, %v1628
        %v1641 = vsel %vm323, %v1628, %v1630
        %v1642 = vsel %vm323, %v1632, %v1634
        %v1643 = vsel %vm323, %v1634, %v1636
        %v1644 = vsel %vm323, %v1636, %v1638
        %1651 = vrot.lane.b32.xlu0 %v1315, 78
        %v1652 = vpop.permute.xlu0 %1651
        %1653 = vrot.lane.b32.xlu0 %v1316, 78
        %v1654 = vpop.permute.xlu0 %1653
        %1655 = vrot.lane.b32.xlu0 %v1317, 78
        %v1656 = vpop.permute.xlu0 %1655
        %1657 = vrot.lane.b32.xlu0 %v1318, 78
        %v1658 = vpop.permute.xlu0 %1657
        %1659 = vrot.lane.b32.xlu0 %v1323, 78
        %v1660 = vpop.permute.xlu0 %1659
        %1661 = vrot.lane.b32.xlu0 %v1324, 78
        %v1662 = vpop.permute.xlu0 %1661
        %1663 = vrot.lane.b32.xlu0 %v1325, 78
        %v1664 = vpop.permute.xlu0 %1663
        %1665 = vrot.lane.b32.xlu0 %v1326, 78
        %v1666 = vpop.permute.xlu0 %1665
        %v1667 = vsel %vm342, %v1652, %v1654
        %v1668 = vsel %vm342, %v1654, %v1656
        %v1669 = vsel %vm342, %v1656, %v1658
        %v1670 = vsel %vm342, %v1660, %v1662
        %v1671 = vsel %vm342, %v1662, %v1664
        %v1672 = vsel %vm342, %v1664, %v1666
        %1679 = vrot.lane.b32.xlu0 %v1315, 76
        %v1680 = vpop.permute.xlu0 %1679
        %1681 = vrot.lane.b32.xlu0 %v1316, 76
        %v1682 = vpop.permute.xlu0 %1681
        %1683 = vrot.lane.b32.xlu0 %v1317, 76
        %v1684 = vpop.permute.xlu0 %1683
        %1685 = vrot.lane.b32.xlu0 %v1318, 76
        %v1686 = vpop.permute.xlu0 %1685
        %1687 = vrot.lane.b32.xlu0 %v1323, 76
        %v1688 = vpop.permute.xlu0 %1687
        %1689 = vrot.lane.b32.xlu0 %v1324, 76
        %v1690 = vpop.permute.xlu0 %1689
        %1691 = vrot.lane.b32.xlu0 %v1325, 76
        %v1692 = vpop.permute.xlu0 %1691
        %1693 = vrot.lane.b32.xlu0 %v1326, 76
        %v1694 = vpop.permute.xlu0 %1693
        %v1695 = vsel %vm361, %v1680, %v1682
        %v1696 = vsel %vm361, %v1682, %v1684
        %v1697 = vsel %vm361, %v1684, %v1686
        %v1698 = vsel %vm361, %v1688, %v1690
        %v1699 = vsel %vm361, %v1690, %v1692
        %v1700 = vsel %vm361, %v1692, %v1694
        %1707 = vrot.lane.b32.xlu0 %v1315, 32
        %v1708 = vpop.permute.xlu0 %1707
        %1709 = vrot.lane.b32.xlu0 %v1316, 32
        %v1710 = vpop.permute.xlu0 %1709
        %1711 = vrot.lane.b32.xlu0 %v1317, 32
        %v1712 = vpop.permute.xlu0 %1711
        %1713 = vrot.lane.b32.xlu0 %v1318, 32
        %v1714 = vpop.permute.xlu0 %1713
        %1715 = vrot.lane.b32.xlu0 %v1323, 32
        %v1716 = vpop.permute.xlu0 %1715
        %1717 = vrot.lane.b32.xlu0 %v1324, 32
        %v1718 = vpop.permute.xlu0 %1717
        %1719 = vrot.lane.b32.xlu0 %v1325, 32
        %v1720 = vpop.permute.xlu0 %1719
        %1721 = vrot.lane.b32.xlu0 %v1326, 32
        %v1722 = vpop.permute.xlu0 %1721
        %v1723 = vsel %vm380, %v1708, %v1710
        %v1724 = vsel %vm380, %v1710, %v1712
        %v1725 = vsel %vm380, %v1712, %v1714
        %v1726 = vsel %vm380, %v1716, %v1718
        %v1727 = vsel %vm380, %v1718, %v1720
        %v1728 = vsel %vm380, %v1720, %v1722
        %1735 = vrot.lane.b32.xlu0 %v1315, 30
        %v1736 = vpop.permute.xlu0 %1735
        %1737 = vrot.lane.b32.xlu0 %v1316, 30
        %v1738 = vpop.permute.xlu0 %1737
        %1739 = vrot.lane.b32.xlu0 %v1317, 30
        %v1740 = vpop.permute.xlu0 %1739
        %1741 = vrot.lane.b32.xlu0 %v1318, 30
        %v1742 = vpop.permute.xlu0 %1741
        %1743 = vrot.lane.b32.xlu0 %v1323, 30
        %v1744 = vpop.permute.xlu0 %1743
        %1745 = vrot.lane.b32.xlu0 %v1324, 30
        %v1746 = vpop.permute.xlu0 %1745
        %1747 = vrot.lane.b32.xlu0 %v1325, 30
        %v1748 = vpop.permute.xlu0 %1747
        %1749 = vrot.lane.b32.xlu0 %v1326, 30
        %v1750 = vpop.permute.xlu0 %1749
        %v1751 = vsel %vm399, %v1736, %v1738
        %v1752 = vsel %vm399, %v1738, %v1740
        %v1753 = vsel %vm399, %v1740, %v1742
        %v1754 = vsel %vm399, %v1744, %v1746
        %v1755 = vsel %vm399, %v1746, %v1748
        %v1756 = vsel %vm399, %v1748, %v1750
        %1763 = vrot.lane.b32.xlu0 %v1315, 28
        %v1764 = vpop.permute.xlu0 %1763
        %1765 = vrot.lane.b32.xlu0 %v1316, 28
        %v1766 = vpop.permute.xlu0 %1765
        %1767 = vrot.lane.b32.xlu0 %v1317, 28
        %v1768 = vpop.permute.xlu0 %1767
        %1769 = vrot.lane.b32.xlu0 %v1318, 28
        %v1770 = vpop.permute.xlu0 %1769
        %1771 = vrot.lane.b32.xlu0 %v1323, 28
        %v1772 = vpop.permute.xlu0 %1771
        %1773 = vrot.lane.b32.xlu0 %v1324, 28
        %v1774 = vpop.permute.xlu0 %1773
        %1775 = vrot.lane.b32.xlu0 %v1325, 28
        %v1776 = vpop.permute.xlu0 %1775
        %1777 = vrot.lane.b32.xlu0 %v1326, 28
        %v1778 = vpop.permute.xlu0 %1777
        %v1779 = vsel %vm418, %v1764, %v1766
        %v1780 = vsel %vm418, %v1766, %v1768
        %v1781 = vsel %vm418, %v1768, %v1770
        %v1782 = vsel %vm418, %v1772, %v1774
        %v1783 = vsel %vm418, %v1774, %v1776
        %v1784 = vsel %vm418, %v1776, %v1778
        %v1791 = vld [vmem:[%s3] sm:$0xff]
        %v1792 = vld [vmem:[%s3 + $0x8] sm:$0xff]
        %v1793 = vld [vmem:[%s3 + $0x10] sm:$0xf]
        %v1794 = vld [vmem:[%s3 + $0x18] sm:$0xf]
        %v1795 = vld [vmem:[%s4] sm:$0xff]
        %v1796 = vld [vmem:[%s4 + $0x8] sm:$0xf]
        %1798 = vset.pattern.permute.xlu0 0
        %1799 = vperm.xlu0 %1798, %v1795
        %v1800 = vpop.permute.xlu0 %1799
        %1803 = vset.pattern.permute.xlu0 0
        %1804 = vperm.xlu0 %1803, %v1796
        %v1805 = vpop.permute.xlu0 %1804
        %vm1807 = vcmask 130048
        %v1809 = vsel %vm1807, %v1792, 0
        %v1812 = vsel %vm1807, %v1794, 0
        %1814 = vmatprep.subr.mxu0 %v1523
        %1815 = vmatpush1.msra.mxu0 %v1522
        %1816 = vmatprep.subr.mxu0 %v1520
        %1817 = vmatpush1.msra.mxu0 %v1519
        %1818 = vmatprep.subr.mxu0 %v1495
        %1819 = vmatpush1.msra.mxu0 %v1494
        %1820 = vmatprep.subr.mxu0 %v1492
        %1821 = vmatpush1.msra.mxu0 %v1491
        %1822 = vmatprep.subr.mxu0 %v1467
        %1823 = vmatpush1.msra.mxu0 %v1466
        %1824 = vmatprep.subr.mxu0 %v1464
        %1825 = vmatpush1.msra.mxu0 %v1463
        %1826 = vmatprep.subr.mxu0 %v1439
        %1827 = vmatpush1.msra.mxu0 %v1438
        %1828 = vmatprep.subr.mxu0 %v1436
        %1829 = vmatpush1.msra.mxu0 %v1435
        %1830 = vmatprep.subr.mxu0 %v1411
        %1831 = vmatpush1.msra.mxu0 %v1410
        %1832 = vmatprep.subr.mxu0 %v1408
        %1833 = vmatpush1.msra.mxu0 %v1407
        %1834 = vmatprep.subr.mxu0 %v1383
        %1835 = vmatpush1.msra.mxu0 %v1382
        %1836 = vmatprep.subr.mxu0 %v1380
        %1837 = vmatpush1.msra.mxu0 %v1379
        %1838 = vmatprep.subr.mxu0 %v1355
        %1839 = vmatpush1.msra.mxu0 %v1354
        %1840 = vmatprep.subr.mxu0 %v1352
        %1841 = vmatpush1.msra.mxu0 %v1351
        %1842 = vmatprep.subr.mxu0 %v1320
        %1843 = vmatpush1.msra.mxu0 %v1319
        %1844 = vmatprep.subr.mxu0 %v1312
        %1845 = vmatpush1.msra.mxu0 %v1311
        %1846 = vmatprep.subr.mxu0 0.0
        %1847 = vmatpush2.msra.mxu0 0.0
        %1848 = vmatprep.subr.mxu0 0.0
        %1849 = vmatpush2.msra.mxu0 0.0
        %1850 = vmatprep.subr.mxu0 0.0
        %1851 = vmatpush2.msra.mxu0 0.0
        %1852 = vmatprep.subr.mxu0 0.0
        %1853 = vmatpush2.msra.mxu0 0.0
        %1854 = vmatprep.subr.mxu0 0.0
        %1855 = vmatpush2.msra.mxu0 0.0
        %1856 = vmatprep.subr.mxu0 0.0
        %1857 = vmatpush2.msra.mxu0 0.0
        %1858 = vmatprep.subr.mxu0 0.0
        %1859 = vmatpush2.msra.mxu0 0.0
        %1860 = vmatprep.subr.mxu0 0.0
        %1861 = vmatpush2.msra.mxu0 0.0
        %1862 = vmatprep.subr.mxu0 0.0
        %1863 = vmatpush2.msra.mxu0 0.0
        %1864 = vmatprep.subr.mxu0 0.0
        %1865 = vmatpush2.msra.mxu0 0.0
        %1866 = vmatprep.subr.mxu0 0.0
        %1867 = vmatpush2.msra.mxu0 0.0
        %1868 = vmatprep.subr.mxu0 0.0
        %1869 = vmatpush2.msra.mxu0 0.0
        %1870 = vmatprep.subr.mxu0 0.0
        %1871 = vmatpush2.msra.mxu0 0.0
        %1872 = vmatprep.subr.mxu0 0.0
        %1873 = vmatpush2.msra.mxu0 0.0
        %1874 = vmatprep.subr.mxu0 %v1551
        %1875 = vmatpush2.msra.mxu0 %v1550
        %1876 = vmatprep.subr.mxu0 %v1548
        %1877 = vmatpush2.msra.mxu0 %v1547
        %1878 = vmatprep.mubr.f32.mxu0 %v1809
        %1879 = vmatmul.mubr.f32.gmra.mxu0 %v1791
        %v1880 = vpop.f32.mrf.mxu0
        %v1881 = vadd.f32 %v1800, %v1880
        %v1882 = vpop.f32.mrf.mxu0
        %v1883 = vadd.f32 %v1800, %v1882
        %1884 = vmatprep.mubr.f32.mxu0 %v1812
        %1885 = vmatmul.mubr.f32.gmra.mxu0 %v1793
        %v1886 = vpop.f32.mrf.mxu0
        %v1887 = vadd.f32 %v1805, %v1886
        %v1888 = vpop.f32.mrf.mxu0
        %v1889 = vadd.f32 %v1805, %v1888
        %1890 = vdwg.mxu0
        %1891 = vmatprep.subr.mxu0 %v1754
        %1892 = vmatpush1.msra.mxu0 %v1524
        %1893 = vmatprep.subr.mxu0 %v1751
        %1894 = vmatpush1.msra.mxu0 %v1521
        %1895 = vmatprep.subr.mxu0 %v1726
        %1896 = vmatpush1.msra.mxu0 %v1496
        %1897 = vmatprep.subr.mxu0 %v1723
        %1898 = vmatpush1.msra.mxu0 %v1493
        %1899 = vmatprep.subr.mxu0 %v1698
        %1900 = vmatpush1.msra.mxu0 %v1468
        %1901 = vmatprep.subr.mxu0 %v1695
        %1902 = vmatpush1.msra.mxu0 %v1465
        %1903 = vmatprep.subr.mxu0 %v1670
        %1904 = vmatpush1.msra.mxu0 %v1440
        %1905 = vmatprep.subr.mxu0 %v1667
        %1906 = vmatpush1.msra.mxu0 %v1437
        %1907 = vmatprep.subr.mxu0 %v1642
        %1908 = vmatpush1.msra.mxu0 %v1412
        %1909 = vmatprep.subr.mxu0 %v1639
        %1910 = vmatpush1.msra.mxu0 %v1409
        %1911 = vmatprep.subr.mxu0 %v1614
        %1912 = vmatpush1.msra.mxu0 %v1384
        %1913 = vmatprep.subr.mxu0 %v1611
        %1914 = vmatpush1.msra.mxu0 %v1381
        %1915 = vmatprep.subr.mxu0 %v1586
        %1916 = vmatpush1.msra.mxu0 %v1356
        %1917 = vmatprep.subr.mxu0 %v1583
        %1918 = vmatpush1.msra.mxu0 %v1353
        %1919 = vmatprep.subr.mxu0 %v1323
        %1920 = vmatpush1.msra.mxu0 %v1321
        %1921 = vmatprep.subr.mxu0 %v1315
        %1922 = vmatpush1.msra.mxu0 %v1313
        %1923 = vmatprep.subr.mxu0 0.0
        %1924 = vmatpush2.msra.mxu0 0.0
        %1925 = vmatprep.subr.mxu0 0.0
        %1926 = vmatpush2.msra.mxu0 0.0
        %1927 = vmatprep.subr.mxu0 0.0
        %1928 = vmatpush2.msra.mxu0 0.0
        %1929 = vmatprep.subr.mxu0 0.0
        %1930 = vmatpush2.msra.mxu0 0.0
        %1931 = vmatprep.subr.mxu0 0.0
        %1932 = vmatpush2.msra.mxu0 0.0
        %1933 = vmatprep.subr.mxu0 0.0
        %1934 = vmatpush2.msra.mxu0 0.0
        %1935 = vmatprep.subr.mxu0 0.0
        %1936 = vmatpush2.msra.mxu0 0.0
        %1937 = vmatprep.subr.mxu0 0.0
        %1938 = vmatpush2.msra.mxu0 0.0
        %1939 = vmatprep.subr.mxu0 0.0
        %1940 = vmatpush2.msra.mxu0 0.0
        %1941 = vmatprep.subr.mxu0 0.0
        %1942 = vmatpush2.msra.mxu0 0.0
        %1943 = vmatprep.subr.mxu0 0.0
        %1944 = vmatpush2.msra.mxu0 0.0
        %1945 = vmatprep.subr.mxu0 0.0
        %1946 = vmatpush2.msra.mxu0 0.0
        %1947 = vmatprep.subr.mxu0 0.0
        %1948 = vmatpush2.msra.mxu0 0.0
        %1949 = vmatprep.subr.mxu0 0.0
        %1950 = vmatpush2.msra.mxu0 0.0
        %1951 = vmatprep.subr.mxu0 %v1782
        %1952 = vmatpush2.msra.mxu0 %v1552
        %1953 = vmatprep.subr.mxu0 %v1779
        %1954 = vmatpush2.msra.mxu0 %v1549
        %1955 = vmatprep.mubr.f32.mxu0 %v1809
        %1956 = vmatmul.mubr.f32.gmra.mxu0 %v1791
        %v1957 = vpop.f32.mrf.mxu0
        %v1958 = vadd.f32 %v1800, %v1957
        %v1959 = vpop.f32.mrf.mxu0
        %v1960 = vadd.f32 %v1800, %v1959
        %1961 = vmatprep.mubr.f32.mxu0 %v1812
        %1962 = vmatmul.mubr.f32.gmra.mxu0 %v1793
        %v1963 = vpop.f32.mrf.mxu0
        %v1964 = vadd.f32 %v1805, %v1963
        %v1965 = vpop.f32.mrf.mxu0
        %v1966 = vadd.f32 %v1805, %v1965
        %1967 = vdwg.mxu0
        %1968 = vmatprep.subr.mxu0 %v1756
        %1969 = vmatpush1.msra.mxu0 %v1755
        %1970 = vmatprep.subr.mxu0 %v1753
        %1971 = vmatpush1.msra.mxu0 %v1752
        %1972 = vmatprep.subr.mxu0 %v1728
        %1973 = vmatpush1.msra.mxu0 %v1727
        %1974 = vmatprep.subr.mxu0 %v1725
        %1975 = vmatpush1.msra.mxu0 %v1724
        %1976 = vmatprep.subr.mxu0 %v1700
        %1977 = vmatpush1.msra.mxu0 %v1699
        %1978 = vmatprep.subr.mxu0 %v1697
        %1979 = vmatpush1.msra.mxu0 %v1696
        %1980 = vmatprep.subr.mxu0 %v1672
        %1981 = vmatpush1.msra.mxu0 %v1671
        %1982 = vmatprep.subr.mxu0 %v1669
        %1983 = vmatpush1.msra.mxu0 %v1668
        %1984 = vmatprep.subr.mxu0 %v1644
        %1985 = vmatpush1.msra.mxu0 %v1643
        %1986 = vmatprep.subr.mxu0 %v1641
        %1987 = vmatpush1.msra.mxu0 %v1640
        %1988 = vmatprep.subr.mxu0 %v1616
        %1989 = vmatpush1.msra.mxu0 %v1615
        %1990 = vmatprep.subr.mxu0 %v1613
        %1991 = vmatpush1.msra.mxu0 %v1612
        %1992 = vmatprep.subr.mxu0 %v1588
        %1993 = vmatpush1.msra.mxu0 %v1587
        %1994 = vmatprep.subr.mxu0 %v1585
        %1995 = vmatpush1.msra.mxu0 %v1584
        %1996 = vmatprep.subr.mxu0 %v1325
        %1997 = vmatpush1.msra.mxu0 %v1324
        %1998 = vmatprep.subr.mxu0 %v1317
        %1999 = vmatpush1.msra.mxu0 %v1316
        %2000 = vmatprep.subr.mxu0 0.0
        %2001 = vmatpush2.msra.mxu0 0.0
        %2002 = vmatprep.subr.mxu0 0.0
        %2003 = vmatpush2.msra.mxu0 0.0
        %2004 = vmatprep.subr.mxu0 0.0
        %2005 = vmatpush2.msra.mxu0 0.0
        %2006 = vmatprep.subr.mxu0 0.0
        %2007 = vmatpush2.msra.mxu0 0.0
        %2008 = vmatprep.subr.mxu0 0.0
        %2009 = vmatpush2.msra.mxu0 0.0
        %2010 = vmatprep.subr.mxu0 0.0
        %2011 = vmatpush2.msra.mxu0 0.0
        %2012 = vmatprep.subr.mxu0 0.0
        %2013 = vmatpush2.msra.mxu0 0.0
        %2014 = vmatprep.subr.mxu0 0.0
        %2015 = vmatpush2.msra.mxu0 0.0
        %2016 = vmatprep.subr.mxu0 0.0
        %2017 = vmatpush2.msra.mxu0 0.0
        %2018 = vmatprep.subr.mxu0 0.0
        %2019 = vmatpush2.msra.mxu0 0.0
        %2020 = vmatprep.subr.mxu0 0.0
        %2021 = vmatpush2.msra.mxu0 0.0
        %2022 = vmatprep.subr.mxu0 0.0
        %2023 = vmatpush2.msra.mxu0 0.0
        %2024 = vmatprep.subr.mxu0 0.0
        %2025 = vmatpush2.msra.mxu0 0.0
        %2026 = vmatprep.subr.mxu0 0.0
        %2027 = vmatpush2.msra.mxu0 0.0
        %2028 = vmatprep.subr.mxu0 %v1784
        %2029 = vmatpush2.msra.mxu0 %v1783
        %2030 = vmatprep.subr.mxu0 %v1781
        %2031 = vmatpush2.msra.mxu0 %v1780
        %2032 = vmatprep.mubr.f32.mxu0 %v1809
        %2033 = vmatmul.mubr.f32.gmra.mxu0 %v1791
        %v2034 = vpop.f32.mrf.mxu0
        %v2035 = vadd.f32 %v1800, %v2034
        %v2036 = vpop.f32.mrf.mxu0
        %v2037 = vadd.f32 %v1800, %v2036
        %2038 = vmatprep.mubr.f32.mxu0 %v1812
        %2039 = vmatmul.mubr.f32.gmra.mxu0 %v1793
        %v2040 = vpop.f32.mrf.mxu0
        %v2041 = vadd.f32 %v1805, %v2040
        %v2042 = vpop.f32.mrf.mxu0
        %v2043 = vadd.f32 %v1805, %v2042
        %2044 = vdwg.mxu0
        %v2045 = vmul.f32 %v1881, 0.5
        %v2046 = vmul.f32 %v1883, 0.5
        %v2047 = vmul.f32 %v1958, 0.5
        %v2048 = vmul.f32 %v1960, 0.5
        %v2049 = vmul.f32 %v2035, 0.5
        %v2050 = vmul.f32 %v2037, 0.5
        %v2051 = vmul.f32 %v1887, 0.5
        %v2052 = vmul.f32 %v1889, 0.5
        %v2053 = vmul.f32 %v1964, 0.5
        %v2054 = vmul.f32 %v1966, 0.5
        %v2055 = vmul.f32 %v2041, 0.5
        %v2056 = vmul.f32 %v2043, 0.5
        %v2057 = vmul.f32 %v1881, 0.70710677
        %v2058 = vmul.f32 %v1883, 0.70710677
        %v2059 = vmul.f32 %v1958, 0.70710677
        %v2060 = vmul.f32 %v1960, 0.70710677
        %v2061 = vmul.f32 %v2035, 0.70710677
        %v2062 = vmul.f32 %v2037, 0.70710677
        %v2063 = vmul.f32 %v1887, 0.70710677
        %v2064 = vmul.f32 %v1889, 0.70710677
        %v2065 = vmul.f32 %v1964, 0.70710677
        %v2066 = vmul.f32 %v1966, 0.70710677
        %v2067 = vmul.f32 %v2041, 0.70710677
        %v2068 = vmul.f32 %v2043, 0.70710677
        %vm2069 = vcmp.lt.f32.partialorder %v2057, 0.0
        %vm2070 = vcmp.lt.f32.partialorder %v2058, 0.0
        %vm2071 = vcmp.lt.f32.partialorder %v2059, 0.0
        %vm2072 = vcmp.lt.f32.partialorder %v2060, 0.0
        %vm2073 = vcmp.lt.f32.partialorder %v2061, 0.0
        %vm2074 = vcmp.lt.f32.partialorder %v2062, 0.0
        %vm2075 = vcmp.lt.f32.partialorder %v2063, 0.0
        %vm2076 = vcmp.lt.f32.partialorder %v2064, 0.0
        %vm2077 = vcmp.lt.f32.partialorder %v2065, 0.0
        %vm2078 = vcmp.lt.f32.partialorder %v2066, 0.0
        %vm2079 = vcmp.lt.f32.partialorder %v2067, 0.0
        %vm2080 = vcmp.lt.f32.partialorder %v2068, 0.0
        %v2081 = vsel %vm2069, -1.0, 1.0
        %v2082 = vsel %vm2070, -1.0, 1.0
        %v2083 = vsel %vm2071, -1.0, 1.0
        %v2084 = vsel %vm2072, -1.0, 1.0
        %v2085 = vsel %vm2073, -1.0, 1.0
        %v2086 = vsel %vm2074, -1.0, 1.0
        %v2087 = vsel %vm2075, -1.0, 1.0
        %v2088 = vsel %vm2076, -1.0, 1.0
        %v2089 = vsel %vm2077, -1.0, 1.0
        %v2090 = vsel %vm2078, -1.0, 1.0
        %v2091 = vsel %vm2079, -1.0, 1.0
        %v2092 = vsel %vm2080, -1.0, 1.0
        %v2093 = vand.u32 2147483647, %v2057
        %v2094 = vand.u32 2147483647, %v2058
        %v2095 = vand.u32 2147483647, %v2059
        %v2096 = vand.u32 2147483647, %v2060
        %v2097 = vand.u32 2147483647, %v2061
        %v2098 = vand.u32 2147483647, %v2062
        %v2099 = vand.u32 2147483647, %v2063
        %v2100 = vand.u32 2147483647, %v2064
        %v2101 = vand.u32 2147483647, %v2065
        %v2102 = vand.u32 2147483647, %v2066
        %v2103 = vand.u32 2147483647, %v2067
        %v2104 = vand.u32 2147483647, %v2068
        %v2105 = vmul.f32 %v2093, 0.3275911
        %v2106 = vmul.f32 %v2094, 0.3275911
        %v2107 = vmul.f32 %v2095, 0.3275911
        %v2108 = vmul.f32 %v2096, 0.3275911
        %v2109 = vmul.f32 %v2097, 0.3275911
        %v2110 = vmul.f32 %v2098, 0.3275911
        %v2111 = vmul.f32 %v2099, 0.3275911
        %v2112 = vmul.f32 %v2100, 0.3275911
        %v2113 = vmul.f32 %v2101, 0.3275911
        %v2114 = vmul.f32 %v2102, 0.3275911
        %v2115 = vmul.f32 %v2103, 0.3275911
        %v2116 = vmul.f32 %v2104, 0.3275911
        %v2117 = vadd.f32 %v2105, 1.0
        %v2118 = vadd.f32 %v2106, 1.0
        %v2119 = vadd.f32 %v2107, 1.0
        %v2120 = vadd.f32 %v2108, 1.0
        %v2121 = vadd.f32 %v2109, 1.0
        %v2122 = vadd.f32 %v2110, 1.0
        %v2123 = vadd.f32 %v2111, 1.0
        %v2124 = vadd.f32 %v2112, 1.0
        %v2125 = vadd.f32 %v2113, 1.0
        %v2126 = vadd.f32 %v2114, 1.0
        %v2127 = vadd.f32 %v2115, 1.0
        %v2128 = vadd.f32 %v2116, 1.0
        %v2129 = vrcp.pop %v2117
        %v2130 = vrcp.pop %v2118
        %v2131 = vrcp.pop %v2119
        %v2132 = vrcp.pop %v2120
        %v2133 = vrcp.pop %v2121
        %v2134 = vrcp.pop %v2122
        %v2135 = vrcp.pop %v2123
        %v2136 = vrcp.pop %v2124
        %v2137 = vrcp.pop %v2125
        %v2138 = vrcp.pop %v2126
        %v2139 = vrcp.pop %v2127
        %v2140 = vrcp.pop %v2128
        %v2141 = vmul.f32 %v2129, 1.0614054
        %v2142 = vmul.f32 %v2130, 1.0614054
        %v2143 = vmul.f32 %v2131, 1.0614054
        %v2144 = vmul.f32 %v2132, 1.0614054
        %v2145 = vmul.f32 %v2133, 1.0614054
        %v2146 = vmul.f32 %v2134, 1.0614054
        %v2147 = vmul.f32 %v2135, 1.0614054
        %v2148 = vmul.f32 %v2136, 1.0614054
        %v2149 = vmul.f32 %v2137, 1.0614054
        %v2150 = vmul.f32 %v2138, 1.0614054
        %v2151 = vmul.f32 %v2139, 1.0614054
        %v2152 = vmul.f32 %v2140, 1.0614054
        %v2153 = vadd.f32 %v2141, -1.4531521
        %v2154 = vadd.f32 %v2142, -1.4531521
        %v2155 = vadd.f32 %v2143, -1.4531521
        %v2156 = vadd.f32 %v2144, -1.4531521
        %v2157 = vadd.f32 %v2145, -1.4531521
        %v2158 = vadd.f32 %v2146, -1.4531521
        %v2159 = vadd.f32 %v2147, -1.4531521
        %v2160 = vadd.f32 %v2148, -1.4531521
        %v2161 = vadd.f32 %v2149, -1.4531521
        %v2162 = vadd.f32 %v2150, -1.4531521
        %v2163 = vadd.f32 %v2151, -1.4531521
        %v2164 = vadd.f32 %v2152, -1.4531521
        %v2165 = vmul.f32 %v2153, %v2129
        %v2166 = vmul.f32 %v2154, %v2130
        %v2167 = vmul.f32 %v2155, %v2131
        %v2168 = vmul.f32 %v2156, %v2132
        %v2169 = vmul.f32 %v2157, %v2133
        %v2170 = vmul.f32 %v2158, %v2134
        %v2171 = vmul.f32 %v2159, %v2135
        %v2172 = vmul.f32 %v2160, %v2136
        %v2173 = vmul.f32 %v2161, %v2137
        %v2174 = vmul.f32 %v2162, %v2138
        %v2175 = vmul.f32 %v2163, %v2139
        %v2176 = vmul.f32 %v2164, %v2140
        %v2177 = vadd.f32 %v2165, 1.4214138
        %v2178 = vadd.f32 %v2166, 1.4214138
        %v2179 = vadd.f32 %v2167, 1.4214138
        %v2180 = vadd.f32 %v2168, 1.4214138
        %v2181 = vadd.f32 %v2169, 1.4214138
        %v2182 = vadd.f32 %v2170, 1.4214138
        %v2183 = vadd.f32 %v2171, 1.4214138
        %v2184 = vadd.f32 %v2172, 1.4214138
        %v2185 = vadd.f32 %v2173, 1.4214138
        %v2186 = vadd.f32 %v2174, 1.4214138
        %v2187 = vadd.f32 %v2175, 1.4214138
        %v2188 = vadd.f32 %v2176, 1.4214138
        %v2189 = vmul.f32 %v2177, %v2129
        %v2190 = vmul.f32 %v2178, %v2130
        %v2191 = vmul.f32 %v2179, %v2131
        %v2192 = vmul.f32 %v2180, %v2132
        %v2193 = vmul.f32 %v2181, %v2133
        %v2194 = vmul.f32 %v2182, %v2134
        %v2195 = vmul.f32 %v2183, %v2135
        %v2196 = vmul.f32 %v2184, %v2136
        %v2197 = vmul.f32 %v2185, %v2137
        %v2198 = vmul.f32 %v2186, %v2138
        %v2199 = vmul.f32 %v2187, %v2139
        %v2200 = vmul.f32 %v2188, %v2140
        %v2201 = vadd.f32 %v2189, -0.28449672
        %v2202 = vadd.f32 %v2190, -0.28449672
        %v2203 = vadd.f32 %v2191, -0.28449672
        %v2204 = vadd.f32 %v2192, -0.28449672
        %v2205 = vadd.f32 %v2193, -0.28449672
        %v2206 = vadd.f32 %v2194, -0.28449672
        %v2207 = vadd.f32 %v2195, -0.28449672
        %v2208 = vadd.f32 %v2196, -0.28449672
        %v2209 = vadd.f32 %v2197, -0.28449672
        %v2210 = vadd.f32 %v2198, -0.28449672
        %v2211 = vadd.f32 %v2199, -0.28449672
        %v2212 = vadd.f32 %v2200, -0.28449672
        %v2213 = vmul.f32 %v2201, %v2129
        %v2214 = vmul.f32 %v2202, %v2130
        %v2215 = vmul.f32 %v2203, %v2131
        %v2216 = vmul.f32 %v2204, %v2132
        %v2217 = vmul.f32 %v2205, %v2133
        %v2218 = vmul.f32 %v2206, %v2134
        %v2219 = vmul.f32 %v2207, %v2135
        %v2220 = vmul.f32 %v2208, %v2136
        %v2221 = vmul.f32 %v2209, %v2137
        %v2222 = vmul.f32 %v2210, %v2138
        %v2223 = vmul.f32 %v2211, %v2139
        %v2224 = vmul.f32 %v2212, %v2140
        %v2225 = vadd.f32 %v2213, 0.2548296
        %v2226 = vadd.f32 %v2214, 0.2548296
        %v2227 = vadd.f32 %v2215, 0.2548296
        %v2228 = vadd.f32 %v2216, 0.2548296
        %v2229 = vadd.f32 %v2217, 0.2548296
        %v2230 = vadd.f32 %v2218, 0.2548296
        %v2231 = vadd.f32 %v2219, 0.2548296
        %v2232 = vadd.f32 %v2220, 0.2548296
        %v2233 = vadd.f32 %v2221, 0.2548296
        %v2234 = vadd.f32 %v2222, 0.2548296
        %v2235 = vadd.f32 %v2223, 0.2548296
        %v2236 = vadd.f32 %v2224, 0.2548296
        %v2237 = vmul.f32 %v2225, %v2129
        %v2238 = vmul.f32 %v2226, %v2130
        %v2239 = vmul.f32 %v2227, %v2131
        %v2240 = vmul.f32 %v2228, %v2132
        %v2241 = vmul.f32 %v2229, %v2133
        %v2242 = vmul.f32 %v2230, %v2134
        %v2243 = vmul.f32 %v2231, %v2135
        %v2244 = vmul.f32 %v2232, %v2136
        %v2245 = vmul.f32 %v2233, %v2137
        %v2246 = vmul.f32 %v2234, %v2138
        %v2247 = vmul.f32 %v2235, %v2139
        %v2248 = vmul.f32 %v2236, %v2140
        %v2249 = vsub.f32 0.0, %v2093
        %v2250 = vsub.f32 0.0, %v2094
        %v2251 = vsub.f32 0.0, %v2095
        %v2252 = vsub.f32 0.0, %v2096
        %v2253 = vsub.f32 0.0, %v2097
        %v2254 = vsub.f32 0.0, %v2098
        %v2255 = vsub.f32 0.0, %v2099
        %v2256 = vsub.f32 0.0, %v2100
        %v2257 = vsub.f32 0.0, %v2101
        %v2258 = vsub.f32 0.0, %v2102
        %v2259 = vsub.f32 0.0, %v2103
        %v2260 = vsub.f32 0.0, %v2104
        %v2261 = vmul.f32 %v2249, %v2093
        %v2262 = vmul.f32 %v2250, %v2094
        %v2263 = vmul.f32 %v2251, %v2095
        %v2264 = vmul.f32 %v2252, %v2096
        %v2265 = vmul.f32 %v2253, %v2097
        %v2266 = vmul.f32 %v2254, %v2098
        %v2267 = vmul.f32 %v2255, %v2099
        %v2268 = vmul.f32 %v2256, %v2100
        %v2269 = vmul.f32 %v2257, %v2101
        %v2270 = vmul.f32 %v2258, %v2102
        %v2271 = vmul.f32 %v2259, %v2103
        %v2272 = vmul.f32 %v2260, %v2104
        %v2273 = vmul.f32 %v2261, 1.442695
        %v2274 = vpow.pop %v2273
        %v2275 = vmul.f32 %v2262, 1.442695
        %v2276 = vpow.pop %v2275
        %v2277 = vmul.f32 %v2263, 1.442695
        %v2278 = vpow.pop %v2277
        %v2279 = vmul.f32 %v2264, 1.442695
        %v2280 = vpow.pop %v2279
        %v2281 = vmul.f32 %v2265, 1.442695
        %v2282 = vpow.pop %v2281
        %v2283 = vmul.f32 %v2266, 1.442695
        %v2284 = vpow.pop %v2283
        %v2285 = vmul.f32 %v2267, 1.442695
        %v2286 = vpow.pop %v2285
        %v2287 = vmul.f32 %v2268, 1.442695
        %v2288 = vpow.pop %v2287
        %v2289 = vmul.f32 %v2269, 1.442695
        %v2290 = vpow.pop %v2289
        %v2291 = vmul.f32 %v2270, 1.442695
        %v2292 = vpow.pop %v2291
        %v2293 = vmul.f32 %v2271, 1.442695
        %v2294 = vpow.pop %v2293
        %v2295 = vmul.f32 %v2272, 1.442695
        %v2296 = vpow.pop %v2295
        %v2297 = vmul.f32 %v2237, %v2274
        %v2298 = vmul.f32 %v2238, %v2276
        %v2299 = vmul.f32 %v2239, %v2278
        %v2300 = vmul.f32 %v2240, %v2280
        %v2301 = vmul.f32 %v2241, %v2282
        %v2302 = vmul.f32 %v2242, %v2284
        %v2303 = vmul.f32 %v2243, %v2286
        %v2304 = vmul.f32 %v2244, %v2288
        %v2305 = vmul.f32 %v2245, %v2290
        %v2306 = vmul.f32 %v2246, %v2292
        %v2307 = vmul.f32 %v2247, %v2294
        %v2308 = vmul.f32 %v2248, %v2296
        %v2309 = vsub.f32 1.0, %v2297
        %v2310 = vsub.f32 1.0, %v2298
        %v2311 = vsub.f32 1.0, %v2299
        %v2312 = vsub.f32 1.0, %v2300
        %v2313 = vsub.f32 1.0, %v2301
        %v2314 = vsub.f32 1.0, %v2302
        %v2315 = vsub.f32 1.0, %v2303
        %v2316 = vsub.f32 1.0, %v2304
        %v2317 = vsub.f32 1.0, %v2305
        %v2318 = vsub.f32 1.0, %v2306
        %v2319 = vsub.f32 1.0, %v2307
        %v2320 = vsub.f32 1.0, %v2308
        %v2321 = vmul.f32 %v2081, %v2309
        %v2322 = vmul.f32 %v2082, %v2310
        %v2323 = vmul.f32 %v2083, %v2311
        %v2324 = vmul.f32 %v2084, %v2312
        %v2325 = vmul.f32 %v2085, %v2313
        %v2326 = vmul.f32 %v2086, %v2314
        %v2327 = vmul.f32 %v2087, %v2315
        %v2328 = vmul.f32 %v2088, %v2316
        %v2329 = vmul.f32 %v2089, %v2317
        %v2330 = vmul.f32 %v2090, %v2318
        %v2331 = vmul.f32 %v2091, %v2319
        %v2332 = vmul.f32 %v2092, %v2320
        %v2333 = vadd.f32 %v2321, 1.0
        %v2334 = vadd.f32 %v2322, 1.0
        %v2335 = vadd.f32 %v2323, 1.0
        %v2336 = vadd.f32 %v2324, 1.0
        %v2337 = vadd.f32 %v2325, 1.0
        %v2338 = vadd.f32 %v2326, 1.0
        %v2339 = vadd.f32 %v2327, 1.0
        %v2340 = vadd.f32 %v2328, 1.0
        %v2341 = vadd.f32 %v2329, 1.0
        %v2342 = vadd.f32 %v2330, 1.0
        %v2343 = vadd.f32 %v2331, 1.0
        %v2344 = vadd.f32 %v2332, 1.0
        %v2345 = vmul.f32 %v2045, %v2333
        %v2346 = vmul.f32 %v2046, %v2334
        %v2347 = vmul.f32 %v2047, %v2335
        %v2348 = vmul.f32 %v2048, %v2336
        %v2349 = vmul.f32 %v2049, %v2337
        %v2350 = vmul.f32 %v2050, %v2338
        %v2351 = vmul.f32 %v2051, %v2339
        %v2352 = vmul.f32 %v2052, %v2340
        %v2353 = vmul.f32 %v2053, %v2341
        %v2354 = vmul.f32 %v2054, %v2342
        %v2355 = vmul.f32 %v2055, %v2343
        %v2356 = vmul.f32 %v2056, %v2344
        %vm2357 = vcmp.lt.f32.partialorder %v2345, 0.0
        %vm2358 = vcmp.lt.f32.partialorder %v2346, 0.0
        %vm2359 = vcmp.lt.f32.partialorder %v2347, 0.0
        %vm2360 = vcmp.lt.f32.partialorder %v2348, 0.0
        %vm2361 = vcmp.lt.f32.partialorder %v2349, 0.0
        %vm2362 = vcmp.lt.f32.partialorder %v2350, 0.0
        %vm2363 = vcmp.lt.f32.partialorder %v2351, 0.0
        %vm2364 = vcmp.lt.f32.partialorder %v2352, 0.0
        %vm2365 = vcmp.lt.f32.partialorder %v2353, 0.0
        %vm2366 = vcmp.lt.f32.partialorder %v2354, 0.0
        %vm2367 = vcmp.lt.f32.partialorder %v2355, 0.0
        %vm2368 = vcmp.lt.f32.partialorder %v2356, 0.0
        %v2369 = vsel %vm2357, -1.0, 1.0
        %v2370 = vsel %vm2358, -1.0, 1.0
        %v2371 = vsel %vm2359, -1.0, 1.0
        %v2372 = vsel %vm2360, -1.0, 1.0
        %v2373 = vsel %vm2361, -1.0, 1.0
        %v2374 = vsel %vm2362, -1.0, 1.0
        %v2375 = vsel %vm2363, -1.0, 1.0
        %v2376 = vsel %vm2364, -1.0, 1.0
        %v2377 = vsel %vm2365, -1.0, 1.0
        %v2378 = vsel %vm2366, -1.0, 1.0
        %v2379 = vsel %vm2367, -1.0, 1.0
        %v2380 = vsel %vm2368, -1.0, 1.0
        %v2381 = vand.u32 2147483647, %v2345
        %v2382 = vand.u32 2147483647, %v2346
        %v2383 = vand.u32 2147483647, %v2347
        %v2384 = vand.u32 2147483647, %v2348
        %v2385 = vand.u32 2147483647, %v2349
        %v2386 = vand.u32 2147483647, %v2350
        %v2387 = vand.u32 2147483647, %v2351
        %v2388 = vand.u32 2147483647, %v2352
        %v2389 = vand.u32 2147483647, %v2353
        %v2390 = vand.u32 2147483647, %v2354
        %v2391 = vand.u32 2147483647, %v2355
        %v2392 = vand.u32 2147483647, %v2356
        %vm2393 = vcmp.gt.f32.partialorder %v2381, 2.4142137
        %vm2394 = vcmp.gt.f32.partialorder %v2382, 2.4142137
        %vm2395 = vcmp.gt.f32.partialorder %v2383, 2.4142137
        %vm2396 = vcmp.gt.f32.partialorder %v2384, 2.4142137
        %vm2397 = vcmp.gt.f32.partialorder %v2385, 2.4142137
        %vm2398 = vcmp.gt.f32.partialorder %v2386, 2.4142137
        %vm2399 = vcmp.gt.f32.partialorder %v2387, 2.4142137
        %vm2400 = vcmp.gt.f32.partialorder %v2388, 2.4142137
        %vm2401 = vcmp.gt.f32.partialorder %v2389, 2.4142137
        %vm2402 = vcmp.gt.f32.partialorder %v2390, 2.4142137
        %vm2403 = vcmp.gt.f32.partialorder %v2391, 2.4142137
        %vm2404 = vcmp.gt.f32.partialorder %v2392, 2.4142137
        %vm2405 = vcmp.gt.f32.partialorder %v2381, 0.41421357
        %vm2406 = vcmp.gt.f32.partialorder %v2382, 0.41421357
        %vm2407 = vcmp.gt.f32.partialorder %v2383, 0.41421357
        %vm2408 = vcmp.gt.f32.partialorder %v2384, 0.41421357
        %vm2409 = vcmp.gt.f32.partialorder %v2385, 0.41421357
        %vm2410 = vcmp.gt.f32.partialorder %v2386, 0.41421357
        %vm2411 = vcmp.gt.f32.partialorder %v2387, 0.41421357
        %vm2412 = vcmp.gt.f32.partialorder %v2388, 0.41421357
        %vm2413 = vcmp.gt.f32.partialorder %v2389, 0.41421357
        %vm2414 = vcmp.gt.f32.partialorder %v2390, 0.41421357
        %vm2415 = vcmp.gt.f32.partialorder %v2391, 0.41421357
        %vm2416 = vcmp.gt.f32.partialorder %v2392, 0.41421357
        %vm2417 = vmxor %vm2393, 1
        %vm2418 = vmxor %vm2394, 1
        %vm2419 = vmxor %vm2395, 1
        %vm2420 = vmxor %vm2396, 1
        %vm2421 = vmxor %vm2397, 1
        %vm2422 = vmxor %vm2398, 1
        %vm2423 = vmxor %vm2399, 1
        %vm2424 = vmxor %vm2400, 1
        %vm2425 = vmxor %vm2401, 1
        %vm2426 = vmxor %vm2402, 1
        %vm2427 = vmxor %vm2403, 1
        %vm2428 = vmxor %vm2404, 1
        %vm2429 = vmand %vm2405, %vm2417
        %vm2430 = vmand %vm2406, %vm2418
        %vm2431 = vmand %vm2407, %vm2419
        %vm2432 = vmand %vm2408, %vm2420
        %vm2433 = vmand %vm2409, %vm2421
        %vm2434 = vmand %vm2410, %vm2422
        %vm2435 = vmand %vm2411, %vm2423
        %vm2436 = vmand %vm2412, %vm2424
        %vm2437 = vmand %vm2413, %vm2425
        %vm2438 = vmand %vm2414, %vm2426
        %vm2439 = vmand %vm2415, %vm2427
        %vm2440 = vmand %vm2416, %vm2428
        %v2441 = vadd.f32 %v2381, 1.0
        %v2442 = vadd.f32 %v2382, 1.0
        %v2443 = vadd.f32 %v2383, 1.0
        %v2444 = vadd.f32 %v2384, 1.0
        %v2445 = vadd.f32 %v2385, 1.0
        %v2446 = vadd.f32 %v2386, 1.0
        %v2447 = vadd.f32 %v2387, 1.0
        %v2448 = vadd.f32 %v2388, 1.0
        %v2449 = vadd.f32 %v2389, 1.0
        %v2450 = vadd.f32 %v2390, 1.0
        %v2451 = vadd.f32 %v2391, 1.0
        %v2452 = vadd.f32 %v2392, 1.0
        %v2453 = vsel %vm2429, %v2441, 1.0
        %v2454 = vsel %vm2430, %v2442, 1.0
        %v2455 = vsel %vm2431, %v2443, 1.0
        %v2456 = vsel %vm2432, %v2444, 1.0
        %v2457 = vsel %vm2433, %v2445, 1.0
        %v2458 = vsel %vm2434, %v2446, 1.0
        %v2459 = vsel %vm2435, %v2447, 1.0
        %v2460 = vsel %vm2436, %v2448, 1.0
        %v2461 = vsel %vm2437, %v2449, 1.0
        %v2462 = vsel %vm2438, %v2450, 1.0
        %v2463 = vsel %vm2439, %v2451, 1.0
        %v2464 = vsel %vm2440, %v2452, 1.0
        %v2465 = vsel %vm2393, %v2381, %v2453
        %v2466 = vsel %vm2394, %v2382, %v2454
        %v2467 = vsel %vm2395, %v2383, %v2455
        %v2468 = vsel %vm2396, %v2384, %v2456
        %v2469 = vsel %vm2397, %v2385, %v2457
        %v2470 = vsel %vm2398, %v2386, %v2458
        %v2471 = vsel %vm2399, %v2387, %v2459
        %v2472 = vsel %vm2400, %v2388, %v2460
        %v2473 = vsel %vm2401, %v2389, %v2461
        %v2474 = vsel %vm2402, %v2390, %v2462
        %v2475 = vsel %vm2403, %v2391, %v2463
        %v2476 = vsel %vm2404, %v2392, %v2464
        %v2477 = vrcp.pop %v2465
        %v2478 = vrcp.pop %v2466
        %v2479 = vrcp.pop %v2467
        %v2480 = vrcp.pop %v2468
        %v2481 = vrcp.pop %v2469
        %v2482 = vrcp.pop %v2470
        %v2483 = vrcp.pop %v2471
        %v2484 = vrcp.pop %v2472
        %v2485 = vrcp.pop %v2473
        %v2486 = vrcp.pop %v2474
        %v2487 = vrcp.pop %v2475
        %v2488 = vrcp.pop %v2476
        %v2489 = vsub.f32 0.0, %v2477
        %v2490 = vsub.f32 0.0, %v2478
        %v2491 = vsub.f32 0.0, %v2479
        %v2492 = vsub.f32 0.0, %v2480
        %v2493 = vsub.f32 0.0, %v2481
        %v2494 = vsub.f32 0.0, %v2482
        %v2495 = vsub.f32 0.0, %v2483
        %v2496 = vsub.f32 0.0, %v2484
        %v2497 = vsub.f32 0.0, %v2485
        %v2498 = vsub.f32 0.0, %v2486
        %v2499 = vsub.f32 0.0, %v2487
        %v2500 = vsub.f32 0.0, %v2488
        %v2501 = vsub.f32 %v2381, 1.0
        %v2502 = vsub.f32 %v2382, 1.0
        %v2503 = vsub.f32 %v2383, 1.0
        %v2504 = vsub.f32 %v2384, 1.0
        %v2505 = vsub.f32 %v2385, 1.0
        %v2506 = vsub.f32 %v2386, 1.0
        %v2507 = vsub.f32 %v2387, 1.0
        %v2508 = vsub.f32 %v2388, 1.0
        %v2509 = vsub.f32 %v2389, 1.0
        %v2510 = vsub.f32 %v2390, 1.0
        %v2511 = vsub.f32 %v2391, 1.0
        %v2512 = vsub.f32 %v2392, 1.0
        %v2513 = vmul.f32 %v2501, %v2477
        %v2514 = vmul.f32 %v2502, %v2478
        %v2515 = vmul.f32 %v2503, %v2479
        %v2516 = vmul.f32 %v2504, %v2480
        %v2517 = vmul.f32 %v2505, %v2481
        %v2518 = vmul.f32 %v2506, %v2482
        %v2519 = vmul.f32 %v2507, %v2483
        %v2520 = vmul.f32 %v2508, %v2484
        %v2521 = vmul.f32 %v2509, %v2485
        %v2522 = vmul.f32 %v2510, %v2486
        %v2523 = vmul.f32 %v2511, %v2487
        %v2524 = vmul.f32 %v2512, %v2488
        %v2525 = vsel %vm2429, %v2513, %v2381
        %v2526 = vsel %vm2430, %v2514, %v2382
        %v2527 = vsel %vm2431, %v2515, %v2383
        %v2528 = vsel %vm2432, %v2516, %v2384
        %v2529 = vsel %vm2433, %v2517, %v2385
        %v2530 = vsel %vm2434, %v2518, %v2386
        %v2531 = vsel %vm2435, %v2519, %v2387
        %v2532 = vsel %vm2436, %v2520, %v2388
        %v2533 = vsel %vm2437, %v2521, %v2389
        %v2534 = vsel %vm2438, %v2522, %v2390
        %v2535 = vsel %vm2439, %v2523, %v2391
        %v2536 = vsel %vm2440, %v2524, %v2392
        %v2537 = vsel %vm2393, %v2489, %v2525
        %v2538 = vsel %vm2394, %v2490, %v2526
        %v2539 = vsel %vm2395, %v2491, %v2527
        %v2540 = vsel %vm2396, %v2492, %v2528
        %v2541 = vsel %vm2397, %v2493, %v2529
        %v2542 = vsel %vm2398, %v2494, %v2530
        %v2543 = vsel %vm2399, %v2495, %v2531
        %v2544 = vsel %vm2400, %v2496, %v2532
        %v2545 = vsel %vm2401, %v2497, %v2533
        %v2546 = vsel %vm2402, %v2498, %v2534
        %v2547 = vsel %vm2403, %v2499, %v2535
        %v2548 = vsel %vm2404, %v2500, %v2536
        %v2549 = vsel %vm2429, 0.7853982, 0.0
        %v2550 = vsel %vm2430, 0.7853982, 0.0
        %v2551 = vsel %vm2431, 0.7853982, 0.0
        %v2552 = vsel %vm2432, 0.7853982, 0.0
        %v2553 = vsel %vm2433, 0.7853982, 0.0
        %v2554 = vsel %vm2434, 0.7853982, 0.0
        %v2555 = vsel %vm2435, 0.7853982, 0.0
        %v2556 = vsel %vm2436, 0.7853982, 0.0
        %v2557 = vsel %vm2437, 0.7853982, 0.0
        %v2558 = vsel %vm2438, 0.7853982, 0.0
        %v2559 = vsel %vm2439, 0.7853982, 0.0
        %v2560 = vsel %vm2440, 0.7853982, 0.0
        %v2561 = vsel %vm2393, 1.5707964, %v2549
        %v2562 = vsel %vm2394, 1.5707964, %v2550
        %v2563 = vsel %vm2395, 1.5707964, %v2551
        %v2564 = vsel %vm2396, 1.5707964, %v2552
        %v2565 = vsel %vm2397, 1.5707964, %v2553
        %v2566 = vsel %vm2398, 1.5707964, %v2554
        %v2567 = vsel %vm2399, 1.5707964, %v2555
        %v2568 = vsel %vm2400, 1.5707964, %v2556
        %v2569 = vsel %vm2401, 1.5707964, %v2557
        %v2570 = vsel %vm2402, 1.5707964, %v2558
        %v2571 = vsel %vm2403, 1.5707964, %v2559
        %v2572 = vsel %vm2404, 1.5707964, %v2560
        %v2573 = vmul.f32 %v2537, %v2537
        %v2574 = vmul.f32 %v2538, %v2538
        %v2575 = vmul.f32 %v2539, %v2539
        %v2576 = vmul.f32 %v2540, %v2540
        %v2577 = vmul.f32 %v2541, %v2541
        %v2578 = vmul.f32 %v2542, %v2542
        %v2579 = vmul.f32 %v2543, %v2543
        %v2580 = vmul.f32 %v2544, %v2544
        %v2581 = vmul.f32 %v2545, %v2545
        %v2582 = vmul.f32 %v2546, %v2546
        %v2583 = vmul.f32 %v2547, %v2547
        %v2584 = vmul.f32 %v2548, %v2548
        %v2585 = vmul.f32 %v2573, 0.080537446
        %v2586 = vmul.f32 %v2574, 0.080537446
        %v2587 = vmul.f32 %v2575, 0.080537446
        %v2588 = vmul.f32 %v2576, 0.080537446
        %v2589 = vmul.f32 %v2577, 0.080537446
        %v2590 = vmul.f32 %v2578, 0.080537446
        %v2591 = vmul.f32 %v2579, 0.080537446
        %v2592 = vmul.f32 %v2580, 0.080537446
        %v2593 = vmul.f32 %v2581, 0.080537446
        %v2594 = vmul.f32 %v2582, 0.080537446
        %v2595 = vmul.f32 %v2583, 0.080537446
        %v2596 = vmul.f32 %v2584, 0.080537446
        %v2597 = vsub.f32 %v2585, 0.13877685
        %v2598 = vsub.f32 %v2586, 0.13877685
        %v2599 = vsub.f32 %v2587, 0.13877685
        %v2600 = vsub.f32 %v2588, 0.13877685
        %v2601 = vsub.f32 %v2589, 0.13877685
        %v2602 = vsub.f32 %v2590, 0.13877685
        %v2603 = vsub.f32 %v2591, 0.13877685
        %v2604 = vsub.f32 %v2592, 0.13877685
        %v2605 = vsub.f32 %v2593, 0.13877685
        %v2606 = vsub.f32 %v2594, 0.13877685
        %v2607 = vsub.f32 %v2595, 0.13877685
        %v2608 = vsub.f32 %v2596, 0.13877685
        %v2609 = vmul.f32 %v2597, %v2573
        %v2610 = vmul.f32 %v2598, %v2574
        %v2611 = vmul.f32 %v2599, %v2575
        %v2612 = vmul.f32 %v2600, %v2576
        %v2613 = vmul.f32 %v2601, %v2577
        %v2614 = vmul.f32 %v2602, %v2578
        %v2615 = vmul.f32 %v2603, %v2579
        %v2616 = vmul.f32 %v2604, %v2580
        %v2617 = vmul.f32 %v2605, %v2581
        %v2618 = vmul.f32 %v2606, %v2582
        %v2619 = vmul.f32 %v2607, %v2583
        %v2620 = vmul.f32 %v2608, %v2584
        %v2621 = vadd.f32 %v2609, 0.19977711
        %v2622 = vadd.f32 %v2610, 0.19977711
        %v2623 = vadd.f32 %v2611, 0.19977711
        %v2624 = vadd.f32 %v2612, 0.19977711
        %v2625 = vadd.f32 %v2613, 0.19977711
        %v2626 = vadd.f32 %v2614, 0.19977711
        %v2627 = vadd.f32 %v2615, 0.19977711
        %v2628 = vadd.f32 %v2616, 0.19977711
        %v2629 = vadd.f32 %v2617, 0.19977711
        %v2630 = vadd.f32 %v2618, 0.19977711
        %v2631 = vadd.f32 %v2619, 0.19977711
        %v2632 = vadd.f32 %v2620, 0.19977711
        %v2633 = vmul.f32 %v2621, %v2573
        %v2634 = vmul.f32 %v2622, %v2574
        %v2635 = vmul.f32 %v2623, %v2575
        %v2636 = vmul.f32 %v2624, %v2576
        %v2637 = vmul.f32 %v2625, %v2577
        %v2638 = vmul.f32 %v2626, %v2578
        %v2639 = vmul.f32 %v2627, %v2579
        %v2640 = vmul.f32 %v2628, %v2580
        %v2641 = vmul.f32 %v2629, %v2581
        %v2642 = vmul.f32 %v2630, %v2582
        %v2643 = vmul.f32 %v2631, %v2583
        %v2644 = vmul.f32 %v2632, %v2584
        %v2645 = vsub.f32 %v2633, 0.3333295
        %v2646 = vsub.f32 %v2634, 0.3333295
        %v2647 = vsub.f32 %v2635, 0.3333295
        %v2648 = vsub.f32 %v2636, 0.3333295
        %v2649 = vsub.f32 %v2637, 0.3333295
        %v2650 = vsub.f32 %v2638, 0.3333295
        %v2651 = vsub.f32 %v2639, 0.3333295
        %v2652 = vsub.f32 %v2640, 0.3333295
        %v2653 = vsub.f32 %v2641, 0.3333295
        %v2654 = vsub.f32 %v2642, 0.3333295
        %v2655 = vsub.f32 %v2643, 0.3333295
        %v2656 = vsub.f32 %v2644, 0.3333295
        %v2657 = vmul.f32 %v2645, %v2573
        %v2658 = vmul.f32 %v2646, %v2574
        %v2659 = vmul.f32 %v2647, %v2575
        %v2660 = vmul.f32 %v2648, %v2576
        %v2661 = vmul.f32 %v2649, %v2577
        %v2662 = vmul.f32 %v2650, %v2578
        %v2663 = vmul.f32 %v2651, %v2579
        %v2664 = vmul.f32 %v2652, %v2580
        %v2665 = vmul.f32 %v2653, %v2581
        %v2666 = vmul.f32 %v2654, %v2582
        %v2667 = vmul.f32 %v2655, %v2583
        %v2668 = vmul.f32 %v2656, %v2584
        %v2669 = vmul.f32 %v2657, %v2537
        %v2670 = vmul.f32 %v2658, %v2538
        %v2671 = vmul.f32 %v2659, %v2539
        %v2672 = vmul.f32 %v2660, %v2540
        %v2673 = vmul.f32 %v2661, %v2541
        %v2674 = vmul.f32 %v2662, %v2542
        %v2675 = vmul.f32 %v2663, %v2543
        %v2676 = vmul.f32 %v2664, %v2544
        %v2677 = vmul.f32 %v2665, %v2545
        %v2678 = vmul.f32 %v2666, %v2546
        %v2679 = vmul.f32 %v2667, %v2547
        %v2680 = vmul.f32 %v2668, %v2548
        %v2681 = vadd.f32 %v2669, %v2537
        %v2682 = vadd.f32 %v2670, %v2538
        %v2683 = vadd.f32 %v2671, %v2539
        %v2684 = vadd.f32 %v2672, %v2540
        %v2685 = vadd.f32 %v2673, %v2541
        %v2686 = vadd.f32 %v2674, %v2542
        %v2687 = vadd.f32 %v2675, %v2543
        %v2688 = vadd.f32 %v2676, %v2544
        %v2689 = vadd.f32 %v2677, %v2545
        %v2690 = vadd.f32 %v2678, %v2546
        %v2691 = vadd.f32 %v2679, %v2547
        %v2692 = vadd.f32 %v2680, %v2548
        %v2693 = vadd.f32 %v2561, %v2681
        %v2694 = vadd.f32 %v2562, %v2682
        %v2695 = vadd.f32 %v2563, %v2683
        %v2696 = vadd.f32 %v2564, %v2684
        %v2697 = vadd.f32 %v2565, %v2685
        %v2698 = vadd.f32 %v2566, %v2686
        %v2699 = vadd.f32 %v2567, %v2687
        %v2700 = vadd.f32 %v2568, %v2688
        %v2701 = vadd.f32 %v2569, %v2689
        %v2702 = vadd.f32 %v2570, %v2690
        %v2703 = vadd.f32 %v2571, %v2691
        %v2704 = vadd.f32 %v2572, %v2692
        %v2705 = vmul.f32 %v2369, %v2693
        %v2706 = vmul.f32 %v2370, %v2694
        %v2707 = vmul.f32 %v2371, %v2695
        %v2708 = vmul.f32 %v2372, %v2696
        %v2709 = vmul.f32 %v2373, %v2697
        %v2710 = vmul.f32 %v2374, %v2698
        %v2711 = vmul.f32 %v2375, %v2699
        %v2712 = vmul.f32 %v2376, %v2700
        %v2713 = vmul.f32 %v2377, %v2701
        %v2714 = vmul.f32 %v2378, %v2702
        %v2715 = vmul.f32 %v2379, %v2703
        %v2716 = vmul.f32 %v2380, %v2704
        %v2717 = vmul.f32 %v2705, 0.15915494
        %v2718 = vmul.f32 %v2706, 0.15915494
        %v2719 = vmul.f32 %v2707, 0.15915494
        %v2720 = vmul.f32 %v2708, 0.15915494
        %v2721 = vmul.f32 %v2709, 0.15915494
        %v2722 = vmul.f32 %v2710, 0.15915494
        %v2723 = vmul.f32 %v2711, 0.15915494
        %v2724 = vmul.f32 %v2712, 0.15915494
        %v2725 = vmul.f32 %v2713, 0.15915494
        %v2726 = vmul.f32 %v2714, 0.15915494
        %v2727 = vmul.f32 %v2715, 0.15915494
        %v2728 = vmul.f32 %v2716, 0.15915494
        %2729 = vst [vmem:[%s263] sm:$0xff] %v2717
        %2730 = vst [vmem:[%s263 + $0x8] sm:$0xff] %v2718
        %2731 = vst [vmem:[%s263 + $0x10] sm:$0xff] %v2719
        %2732 = vst [vmem:[%s263 + $0x18] sm:$0xf] %v2723
        %2733 = vst [vmem:[%s263 + $0x20] sm:$0xf] %v2724
        %2734 = vst [vmem:[%s263 + $0x28] sm:$0xf] %v2725
        %s2735 = scalar_lea.vmem %s263, 48
        %2736 = vst [vmem:[%s2735] sm:$0xff] %v2720
        %2737 = vst [vmem:[%s2735 + $0x8] sm:$0xff] %v2721
        %2738 = vst [vmem:[%s2735 + $0x10] sm:$0xff] %v2722
        %2739 = vst [vmem:[%s2735 + $0x18] sm:$0xf] %v2726
        %2740 = vst [vmem:[%s2735 + $0x20] sm:$0xf] %v2727
        %2741 = vst [vmem:[%s2735 + $0x28] sm:$0xf] %v2728
        %s2742 = smul.u32 2, %s20
        %p2743 = scmp.lt.s32.totalorder %s2742, 3
        %s2744 = scalar_select %p2743, %s2742, 3
        %s2745 = smul.addr %s2744, 6
        %s2746 = smul.addr %s2745, 8
        %s2747 = scalar_lea.vmem %s5, %s2746
        // Predicated region
        $region49: #{tpu_custom_call.1} parent=39 // pred_check
          %p2748 = pneg %p148
        $region50: #{tpu_custom_call.1} parent=39 // pred_check_branch
          %2750 = sbr.rel (%p2748) target = $region52
        $region51: #{tpu_custom_call.1} parent=39 // pred_region
          %s2751 = smul.u32 2, %s20
        $region52: #{tpu_custom_call.1} parent=39 // pred_fallthru
          _
      $region40: #{tpu_custom_call.1} parent=5 // pred_fallthru
        _
      %p2752 = scmp.le.s32.totalorder 2, %s15
      // Predicated region
      $region53: #{tpu_custom_call.1} parent=5 // pred_check
        %p2753 = pneg %p2752
      $region54: #{tpu_custom_call.1} parent=5 // pred_check_branch
        %2755 = sbr.rel (%p2753) target = $region56
      $region55: #{tpu_custom_call.1} parent=5 // pred_region
        %s2756 = ssub.s32 %s15, 2
        // Predicated region
        $region57: #{tpu_custom_call.1} parent=55 // pred_check
          %p2757 = pneg %p154
        $region58: #{tpu_custom_call.1} parent=55 // pred_check_branch
          %2759 = sbr.rel (%p2757) target = $region60
        $region59: #{tpu_custom_call.1} parent=55 // pred_region
          %s2760 = smul.u32 2, %s21
          %p2761 = scmp.lt.s32.totalorder %s2760, 3
          %s2762 = scalar_select %p2761, %s2760, 3
          %s2763 = smul.addr %s2762, 6
          %s2764 = smul.addr %s2763, 8
          %s2765 = scalar_lea.vmem %s5, %s2764
        $region60: #{tpu_custom_call.1} parent=55 // pred_fallthru
          _
      $region56: #{tpu_custom_call.1} parent=5 // pred_fallthru
        _
    $region6: #{tpu_custom_call.1} parent=1 // loop_footer
      %s19 = sadd.s32 1, %s15
    $region7: #{tpu_custom_call.1} parent=1 // loop_footer_branch
      %14 = sbr.rel target = $region3
    $region8: #{tpu_custom_call.1} parent=1 // loop_exit
      _
    %2766 = vsyncpa [#allocation3], 1
    %s2767 = scalar_lea.sflag [#allocation3], 1
    %2768 = vsyncpa %s2767, 1
    %2769 = vsyncpa [#allocation5], 1

</llo_original>
